<compile_context>
chip_gen: v6e
topology: v6e:2x2x1
jax: 0.10.0
libtpu: 0.0.40
codegen_flags: <defaults>
</compile_context>

<pallas_src>
import numpy as np
import jax
import jax.numpy as jnp
from jax.experimental import pallas as pl
from jax.experimental.pallas import tpu as pltpu


def _pad_up(x, mult):
    return ((x + mult - 1) // mult) * mult


# ----------------------------------------------------------------------------
# Host-side: dense, padded encodings of the Tanner-graph structure.
#   A[t][e', e]  : iter-t edge weight if e' is in the var-sum set of edge e
#   W_e[t][0, e] : iter-t llr weight of variable var(e)
#   S[v, e]      : 1 if v == var(e)        (variable -> edge scatter, wrapper)
#   C[e, c]      : 1 if check(e) == c      (check incidence; P = C C^T - I)
#   F[e', v]     : final edge weight if var(e') == v
#   wfl[0, v]    : final llr weight for variable v
# ----------------------------------------------------------------------------
def build_decoder_operands(H, iterations):
    m, n = H.shape
    edges = [(c, v) for c in range(m) for v in range(n) if H[c, v] != 0]
    E = len(edges)
    n_pad = max(128, _pad_up(n, 128))
    E_pad = max(128, _pad_up(E, 128))
    m_pad = max(128, _pad_up(m, 128))

    vsum_sets = [[j for j, (c2, v2) in enumerate(edges) if v2 == v and c2 != c]
                 for (c, v) in edges]
    total_weights = sum(len(s) for s in vsum_sets)

    # deterministic parameter init == torch.ones(...) in decoder.__init__
    w_iter = [np.ones(total_weights, np.float64) for _ in range(iterations)]
    w_llr_iter = [np.ones(n, np.float64) for _ in range(iterations)]
    w_final = np.ones(E, np.float64)
    w_llr_final = np.ones(n, np.float64)

    A = np.zeros((iterations, E_pad, E_pad), np.float32)
    W_e = np.zeros((iterations, 1, E_pad), np.float32)
    for t in range(iterations):
        pos = 0
        for e, s in enumerate(vsum_sets):
            for e2 in s:
                A[t, e2, e] = w_iter[t][pos]
                pos += 1
        for e, (c, v) in enumerate(edges):
            W_e[t, 0, e] = w_llr_iter[t][v]

    S = np.zeros((n_pad, E_pad), np.float32)
    for e, (c, v) in enumerate(edges):
        S[v, e] = 1.0

    C = np.zeros((E_pad, m_pad), np.float32)
    for e, (c, v) in enumerate(edges):
        C[e, c] = 1.0

    F = np.zeros((E_pad, n_pad), np.float32)
    j = 0
    for v in range(n):
        for e, (c, v2) in enumerate(edges):
            if v2 == v:
                F[e, v] = w_final[j]
                j += 1

    wfl = np.zeros((1, n_pad), np.float32)
    wfl[0, :n] = w_llr_final

    return dict(A=A, W_e=W_e, S=S, C=C, F=F, wfl=wfl,
                E=E, E_pad=E_pad, n_pad=n_pad, m_pad=m_pad)


# ----------------------------------------------------------------------------
# Pallas kernel: k BP iterations per grid step; final output on the last one.
# ----------------------------------------------------------------------------
def make_decoder_kernel(k, bt):
    def kernel(llr_ref, llr_e_ref, A_ref, we_ref, C_ref, Ct_ref, F_ref,
               wfl_ref, out_ref, c2v_ref):
        tb = pl.program_id(1)

        @pl.when(tb == 0)
        def _init():
            c2v_ref[...] = jnp.zeros_like(c2v_ref)

        llr_e = llr_e_ref[...]                       # [Bt, E_pad]  f32
        # Hoist the bf16->f32 converts of the small constant operands.
        C = C_ref[...].astype(jnp.float32)           # [E_pad, m_pad]
        Ct = Ct_ref[...].astype(jnp.float32)         # [m_pad, E_pad]

        for i in range(k):   # static unroll: amortizes per-grid-step overhead
            # ---- variable -> check : MXU matmul over the var-sum sets ------
            # (c2v kept f32 for accuracy; casting the LHS to bf16 would use
            #  the native bf16 MXU path — a validated-tradeoff option.)
            wsum = (jnp.dot(c2v_ref[...], A_ref[i],
                            preferred_element_type=jnp.float32)
                    + llr_e * we_ref[i])
            v2c = jnp.tanh(0.5 * wsum)               # [Bt, E_pad]

            # ---- check -> var : exclusive product over each check ----------
            #   P = C C^T - I  =>  X @ P = (X @ C) @ C^T - X
            # log/sign domain; log_mag and the sign-parity indicator are
            # stacked along the sublane axis so the (small) C / C^T weight
            # loads are paid once per iteration.
            log_mag = jnp.log(jnp.maximum(jnp.abs(v2c), 1e-30))
            neg = (v2c < 0.0).astype(jnp.float32)
            X = jnp.concatenate([log_mag, neg], axis=0)          # [2Bt, E_pad]
            T = jnp.dot(X, C, preferred_element_type=jnp.float32)   # [2Bt, m_pad]
            Y = jnp.dot(T, Ct, preferred_element_type=jnp.float32) - X

            # s_mag <= 0 exactly for real edges; the clamp only guards padded
            # edge columns (C row == 0 there) and rounding of the subtraction.
            s_mag = jnp.minimum(Y[:bt], 0.0)
            parity = Y[bt:]
            parity_mod2 = parity - 2.0 * jnp.floor(parity * 0.5)
            sign = 1.0 - 2.0 * parity_mod2
            y = 0.9995 * sign * jnp.exp(s_mag)

            # c2v = 2*atanh(y) = log(1+y) - log(1-y)  (exact; EUP logs)
            c2v_ref[...] = jnp.log(1.0 + y) - jnp.log(1.0 - y)

        # ---- final marginalization + sigmoid (last iteration block only) ---
        @pl.when(tb == pl.num_programs(1) - 1)
        def _final():
            logits = (jnp.dot(c2v_ref[...], F_ref[...],
                              preferred_element_type=jnp.float32)
                      + llr_ref[...] * wfl_ref[...])
            out_ref[...] = pl.reciprocal(1.0 + jnp.exp(-logits), approx=True)

    return kernel


def decoder_forward(llr, ops, iterations):
    B, n = llr.shape
    n_pad, E_pad, m_pad = ops["n_pad"], ops["E_pad"], ops["m_pad"]

    # Batch tiling: single batch tile for small/medium batch so the A[t]
    # stream (the dominant HBM cost) is paid exactly once per iteration.
    B_pad = max(8, _pad_up(B, 8))
    if B_pad <= 256:
        Bt = B_pad
    else:
        B_pad = _pad_up(B, 128)
        Bt = 128

    # Unroll k BP iterations per grid step (k | iterations, slab fits budget).
    slab_bytes = E_pad * E_pad * 2                      # one bf16 A[t]
    k = 1
    for cand in range(1, min(iterations, 8) + 1):
        if iterations % cand == 0 and cand * slab_bytes <= (6 << 20):
            k = cand

    llr_p = jnp.zeros((B_pad, n_pad), jnp.float32).at[:B, :n].set(
        llr.astype(jnp.float32))
    # llr -> edge scatter hoisted out of the kernel (one-off XLA matmul).
    S = jnp.asarray(ops["S"], dtype=jnp.float32)
    llr_e = jnp.dot(llr_p, S, preferred_element_type=jnp.float32)

    # Structural / weight matrices in bf16 (0/1 and 1.0 entries -> lossless),
    # f32 MXU accumulation.
    A = jnp.asarray(ops["A"], dtype=jnp.bfloat16)
    C = jnp.asarray(ops["C"], dtype=jnp.bfloat16)
    Ct = jnp.asarray(ops["C"].T.copy(), dtype=jnp.bfloat16)
    F = jnp.asarray(ops["F"], dtype=jnp.bfloat16)
    W_e = jnp.asarray(ops["W_e"], dtype=jnp.float32)
    wfl = jnp.asarray(ops["wfl"], dtype=jnp.float32)

    # Explicit VMEM budget from the actual resident set (double-buffered
    # inputs + scratch + temporaries headroom), clamped to v7x-safe 64 MiB.
    resident = (2 * (k * E_pad * E_pad * 2)          # A slab, bf16, 2 buffers
                + 2 * (k * 1 * E_pad * 4)            # W_e
                + 2 * 2 * (E_pad * m_pad * 2)        # C and Ct
                + 2 * (E_pad * n_pad * 2)            # F
                + 2 * (1 * n_pad * 4)                # wfl
                + 2 * 2 * (Bt * n_pad * 4)           # llr in + out
                + 2 * (Bt * E_pad * 4)               # llr_e
                + (Bt * E_pad * 4)                   # c2v scratch
                + 10 * (Bt * E_pad * 4))             # kernel temporaries
    vmem_limit = int(min(max(int(resident * 1.25), 16 << 20), 64 << 20))

    kernel = make_decoder_kernel(k, Bt)
    out = pl.pallas_call(
        kernel,
        out_shape=jax.ShapeDtypeStruct((B_pad, n_pad), jnp.float32),
        grid_spec=pltpu.PrefetchScalarGridSpec(
            num_scalar_prefetch=0,
            grid=(B_pad // Bt, iterations // k),
            in_specs=[
                pl.BlockSpec((Bt, n_pad), lambda b, t: (b, 0)),            # llr
                pl.BlockSpec((Bt, E_pad), lambda b, t: (b, 0)),            # llr_e
                pl.BlockSpec((k, E_pad, E_pad), lambda b, t: (t, 0, 0)),   # A[t..t+k)
                pl.BlockSpec((k, 1, E_pad), lambda b, t: (t, 0, 0)),       # W_e
                pl.BlockSpec((E_pad, m_pad), lambda b, t: (0, 0)),         # C
                pl.BlockSpec((m_pad, E_pad), lambda b, t: (0, 0)),         # C^T
                pl.BlockSpec((E_pad, n_pad), lambda b, t: (0, 0)),         # F
                pl.BlockSpec((1, n_pad), lambda b, t: (0, 0)),             # wfl
            ],
            out_specs=pl.BlockSpec((Bt, n_pad), lambda b, t: (b, 0)),
            scratch_shapes=[
                pltpu.VMEM((Bt, E_pad), jnp.float32),   # c2v message state
            ],
        ),
        compiler_params=pltpu.CompilerParams(
            dimension_semantics=("parallel", "arbitrary"),
            vmem_limit_bytes=vmem_limit),
    )(llr_p, llr_e, A, W_e, C, Ct, F, wfl)

    return out[:B, :n]


# ----------------------------------------------------------------------------
# NumPy reference following the original torch gather / slice / loop code
# path literally (weights == ones), used to verify the dense-kernel encoding.
# ----------------------------------------------------------------------------
def reference_forward(llr, H, iterations):
    m, n = H.shape
    edges = [(c, v) for c in range(m) for v in range(n) if H[c, v] != 0]
    E = len(edges)
    B = llr.shape[0]

    v_sum_indices, ind_vsum = [], [0]
    c_prod_indices, ind_cprod = [], [0]
    for (c, v) in edges:
        s = [j for j, (c2, v2) in enumerate(edges) if v2 == v and c2 != c]
        v_sum_indices += s
        ind_vsum.append(ind_vsum[-1] + len(s))
        s = [j for j, (c2, v2) in enumerate(edges) if c2 == c and v2 != v]
        c_prod_indices += s
        ind_cprod.append(ind_cprod[-1] + len(s))
    ind_final, marg = [], [0]
    for v in range(n):
        s = [j for j, (c2, v2) in enumerate(edges) if v2 == v]
        ind_final += s
        marg.append(marg[-1] + len(s))

    c2v = np.zeros((B, E), np.float64)
    for _ in range(iterations):
        g = c2v[:, v_sum_indices] if v_sum_indices else np.zeros((B, 0))
        cols = []
        for i, (c, v) in enumerate(edges):
            i1, i2 = ind_vsum[i], ind_vsum[i + 1]
            if i1 != i2:
                cols.append(g[:, i1:i2].sum(axis=1) + llr[:, v])
            else:
                cols.append(llr[:, v])
        v2c = np.tanh(0.5 * np.stack(cols, axis=1))
        g2 = v2c[:, c_prod_indices] if c_prod_indices else np.zeros((B, 0))
        cols = []
        for i in range(E):
            i1, i2 = ind_cprod[i], ind_cprod[i + 1]
            if i1 != i2:
                cols.append(np.prod(g2[:, i1:i2], axis=1))
            else:
                cols.append(np.ones(B))
        c2v = 2.0 * np.arctanh(0.9995 * np.stack(cols, axis=1))

    g3 = c2v[:, ind_final]
    cols = []
    for v in range(n):
        i1, i2 = marg[v], marg[v + 1]
        if i1 != i2:
            cols.append(g3[:, i1:i2].sum(axis=1) + llr[:, v])
        else:
            cols.append(llr[:, v])
    out = np.stack(cols, axis=1)
    return 1.0 / (1.0 + np.exp(-out))


if __name__ == "__main__":
    # Small (7,4) Hamming-code parity-check matrix: m=3 checks, n=7 variables.
    H = np.array([[1, 0, 1, 0, 1, 0, 1],
                  [0, 1, 1, 0, 0, 1, 1],
                  [0, 0, 0, 1, 1, 1, 1]], dtype=np.int64)
    iterations = 3
    batch = 2
    m, n = H.shape

    ops = build_decoder_operands(H, iterations)

    key = jax.random.PRNGKey(0)
    llr = jax.random.normal(key, (batch, n), dtype=jnp.float32) * 2.0

    out = decoder_forward(llr, ops, iterations)
    out = jax.block_until_ready(out)

    # Verify against a literal NumPy re-implementation of the torch forward.
    ref = reference_forward(np.asarray(llr, dtype=np.float64), H, iterations)
    assert out.shape == (batch, n)
    assert np.allclose(np.asarray(out, dtype=np.float64), ref, atol=1e-2, rtol=1e-2)

    print("KERNEL_OK")
</pallas_src>

<mosaic_0001>
module attributes {stable_mosaic.version = 11 : i64} {
  func.func @kernel(%arg0: i32, %arg1: i32, %arg2: memref<8x128xf32, #tpu.memory_space<vmem>>, %arg3: memref<8x128xf32, #tpu.memory_space<vmem>>, %arg4: memref<3x128x128xbf16, #tpu.memory_space<vmem>>, %arg5: memref<3x1x128xf32, #tpu.memory_space<vmem>>, %arg6: memref<128x128xbf16, #tpu.memory_space<vmem>>, %arg7: memref<128x128xbf16, #tpu.memory_space<vmem>>, %arg8: memref<128x128xbf16, #tpu.memory_space<vmem>>, %arg9: memref<1x128xf32, #tpu.memory_space<vmem>>, %arg10: memref<8x128xf32, #tpu.memory_space<vmem>>, %arg11: memref<8x128xf32, #tpu.memory_space<vmem>>) attributes {dimension_semantics = [#tpu.dimension_semantics<parallel>, #tpu.dimension_semantics<arbitrary>], iteration_bounds = array<i64: 1, 1>, scalar_prefetch = 0 : i64, scratch_operands = 1 : i64, tpu.core_type = #tpu.core_type<tc>, window_params = [{transform_indices = @transform_0, window_bounds = array<i64: 8, 128>}, {transform_indices = @transform_1, window_bounds = array<i64: 8, 128>}, {transform_indices = @transform_2, window_bounds = array<i64: 3, 128, 128>}, {transform_indices = @transform_3, window_bounds = array<i64: 3, 1, 128>}, {pipeline_mode = #tpu.pipeline_mode<synchronous>, transform_indices = @transform_4, window_bounds = array<i64: 128, 128>}, {pipeline_mode = #tpu.pipeline_mode<synchronous>, transform_indices = @transform_5, window_bounds = array<i64: 128, 128>}, {pipeline_mode = #tpu.pipeline_mode<synchronous>, transform_indices = @transform_6, window_bounds = array<i64: 128, 128>}, {pipeline_mode = #tpu.pipeline_mode<synchronous>, transform_indices = @transform_7, window_bounds = array<i64: 1, 128>}, {transform_indices = @transform_8, window_bounds = array<i64: 8, 128>}]} {
    %c0_i32 = arith.constant 0 : i32
    %0 = arith.cmpi eq, %arg1, %c0_i32 : i32
    %1 = arith.extui %0 : i1 to i32
    %c0_i32_0 = arith.constant 0 : i32
    %2 = arith.cmpi ne, %1, %c0_i32_0 : i32
    scf.if %2 {
      %cst_77 = arith.constant 0.000000e+00 : f32
      %161 = vector.broadcast %cst_77 : f32 to vector<8x128xf32>
      %c0_78 = arith.constant 0 : index
      %c0_79 = arith.constant 0 : index
      %162 = vector.load %arg11[%c0_78, %c0_79] : memref<8x128xf32, #tpu.memory_space<vmem>>, vector<8x128xf32>
      tpu.vector_store %arg11[%c0_78, %c0_79], %161 {strides = array<i32>} : memref<8x128xf32, #tpu.memory_space<vmem>>, vector<8x128xf32>,
    } else {
    }
    %c0 = arith.constant 0 : index
    %c0_1 = arith.constant 0 : index
    %3 = vector.load %arg3[%c0, %c0_1] : memref<8x128xf32, #tpu.memory_space<vmem>>, vector<8x128xf32>
    %c0_2 = arith.constant 0 : index
    %c0_3 = arith.constant 0 : index
    %4 = vector.load %arg6[%c0_2, %c0_3] : memref<128x128xbf16, #tpu.memory_space<vmem>>, vector<128x128xbf16>
    %5 = arith.extf %4 : vector<128x128xbf16> to vector<128x128xf32>
    %c0_4 = arith.constant 0 : index
    %c0_5 = arith.constant 0 : index
    %6 = vector.load %arg7[%c0_4, %c0_5] : memref<128x128xbf16, #tpu.memory_space<vmem>>, vector<128x128xbf16>
    %7 = arith.extf %6 : vector<128x128xbf16> to vector<128x128xf32>
    %c0_6 = arith.constant 0 : index
    %c0_7 = arith.constant 0 : index
    %8 = vector.load %arg11[%c0_6, %c0_7] : memref<8x128xf32, #tpu.memory_space<vmem>>, vector<8x128xf32>
    %c0_8 = arith.constant 0 : index
    %c0_9 = arith.constant 0 : index
    %c0_10 = arith.constant 0 : index
    %9 = vector.load %arg4[%c0_8, %c0_9, %c0_10] : memref<3x128x128xbf16, #tpu.memory_space<vmem>>, vector<1x128x128xbf16>
    %10 = vector.shape_cast %9 : vector<1x128x128xbf16> to vector<128x128xbf16>
    %cst = arith.constant dense<0.000000e+00> : vector<8x128xf32>
    %11 = tpu.matmul %8, %10, %cst {dimension_numbers = #tpu.dot_dimension_numbers<[1], [0], [0], [1], [0, 0, 1, 1], [], []>} : vector<8x128xf32>, vector<128x128xbf16>, vector<8x128xf32> -> vector<8x128xf32>
    %c0_11 = arith.constant 0 : index
    %c0_12 = arith.constant 0 : index
    %c0_13 = arith.constant 0 : index
    %12 = vector.load %arg5[%c0_11, %c0_12, %c0_13] : memref<3x1x128xf32, #tpu.memory_space<vmem>>, vector<1x1x128xf32>
    %13 = vector.shape_cast %12 : vector<1x1x128xf32> to vector<1x128xf32>
    %14 = vector.broadcast %13 : vector<1x128xf32> to vector<8x128xf32>
    %15 = arith.mulf %3, %14 : vector<8x128xf32>
    %16 = arith.addf %11, %15 : vector<8x128xf32>
    %cst_14 = arith.constant 5.000000e-01 : f32
    %17 = vector.broadcast %cst_14 : f32 to vector<8x128xf32>
    %18 = arith.mulf %17, %16 : vector<8x128xf32>
    %19 = math.tanh %18 : vector<8x128xf32>
    %20 = math.absf %19 : vector<8x128xf32>
    %cst_15 = arith.constant 1.000000e-30 : f32
    %21 = vector.broadcast %cst_15 : f32 to vector<8x128xf32>
    %22 = arith.maximumf %20, %21 : vector<8x128xf32>
    %23 = math.log %22 : vector<8x128xf32>
    %cst_16 = arith.constant 0.000000e+00 : f32
    %24 = vector.broadcast %cst_16 : f32 to vector<8x128xf32>
    %25 = arith.cmpf olt, %19, %24 : vector<8x128xf32>
    %26 = arith.extui %25 : vector<8x128xi1> to vector<8x128xi32>
    %27 = arith.sitofp %26 : vector<8x128xi32> to vector<8x128xf32>
    %28 = tpu.concatenate %23, %27 in 0 : vector<8x128xf32>, vector<8x128xf32> -> vector<16x128xf32>
    %cst_17 = arith.constant dense<0.000000e+00> : vector<16x128xf32>
    %29 = tpu.matmul %28, %5, %cst_17 {dimension_numbers = #tpu.dot_dimension_numbers<[1], [0], [0], [1], [0, 0, 1, 1], [], []>} : vector<16x128xf32>, vector<128x128xf32>, vector<16x128xf32> -> vector<16x128xf32>
    %cst_18 = arith.constant dense<0.000000e+00> : vector<16x128xf32>
    %30 = tpu.matmul %29, %7, %cst_18 {dimension_numbers = #tpu.dot_dimension_numbers<[1], [0], [0], [1], [0, 0, 1, 1], [], []>} : vector<16x128xf32>, vector<128x128xf32>, vector<16x128xf32> -> vector<16x128xf32>
    %31 = arith.subf %30, %28 : vector<16x128xf32>
    %32 = vector.extract_strided_slice %31 {offsets = [0, 0], sizes = [8, 128], strides = [1, 1]} : vector<16x128xf32> to vector<8x128xf32>
    %cst_19 = arith.constant 0.000000e+00 : f32
    %33 = vector.broadcast %cst_19 : f32 to vector<8x128xf32>
    %34 = arith.minimumf %32, %33 : vector<8x128xf32>
    %35 = vector.extract_strided_slice %31 {offsets = [8, 0], sizes = [8, 128], strides = [1, 1]} : vector<16x128xf32> to vector<8x128xf32>
    %cst_20 = arith.constant 5.000000e-01 : f32
    %36 = vector.broadcast %cst_20 : f32 to vector<8x128xf32>
    %37 = arith.mulf %35, %36 : vector<8x128xf32>
    %38 = math.floor %37 : vector<8x128xf32>
    %cst_21 = arith.constant 2.000000e+00 : f32
    %39 = vector.broadcast %cst_21 : f32 to vector<8x128xf32>
    %40 = arith.mulf %39, %38 : vector<8x128xf32>
    %41 = arith.subf %35, %40 : vector<8x128xf32>
    %cst_22 = arith.constant 2.000000e+00 : f32
    %42 = vector.broadcast %cst_22 : f32 to vector<8x128xf32>
    %43 = arith.mulf %42, %41 : vector<8x128xf32>
    %cst_23 = arith.constant 1.000000e+00 : f32
    %44 = vector.broadcast %cst_23 : f32 to vector<8x128xf32>
    %45 = arith.subf %44, %43 : vector<8x128xf32>
    %cst_24 = arith.constant 0.999499976 : f32
    %46 = vector.broadcast %cst_24 : f32 to vector<8x128xf32>
    %47 = arith.mulf %46, %45 : vector<8x128xf32>
    %48 = math.exp %34 : vector<8x128xf32>
    %49 = arith.mulf %47, %48 : vector<8x128xf32>
    %cst_25 = arith.constant 1.000000e+00 : f32
    %50 = vector.broadcast %cst_25 : f32 to vector<8x128xf32>
    %51 = arith.addf %50, %49 : vector<8x128xf32>
    %52 = math.log %51 : vector<8x128xf32>
    %cst_26 = arith.constant 1.000000e+00 : f32
    %53 = vector.broadcast %cst_26 : f32 to vector<8x128xf32>
    %54 = arith.subf %53, %49 : vector<8x128xf32>
    %55 = math.log %54 : vector<8x128xf32>
    %56 = arith.subf %52, %55 : vector<8x128xf32>
    %c0_27 = arith.constant 0 : index
    %c0_28 = arith.constant 0 : index
    %57 = vector.load %arg11[%c0_27, %c0_28] : memref<8x128xf32, #tpu.memory_space<vmem>>, vector<8x128xf32>
    tpu.vector_store %arg11[%c0_27, %c0_28], %56 {strides = array<i32>} : memref<8x128xf32, #tpu.memory_space<vmem>>, vector<8x128xf32>,
    %c0_29 = arith.constant 0 : index
    %c0_30 = arith.constant 0 : index
    %58 = vector.load %arg11[%c0_29, %c0_30] : memref<8x128xf32, #tpu.memory_space<vmem>>, vector<8x128xf32>
    %c1 = arith.constant 1 : index
    %c0_31 = arith.constant 0 : index
    %c0_32 = arith.constant 0 : index
    %59 = vector.load %arg4[%c1, %c0_31, %c0_32] : memref<3x128x128xbf16, #tpu.memory_space<vmem>>, vector<1x128x128xbf16>
    %60 = vector.shape_cast %59 : vector<1x128x128xbf16> to vector<128x128xbf16>
    %cst_33 = arith.constant dense<0.000000e+00> : vector<8x128xf32>
    %61 = tpu.matmul %58, %60, %cst_33 {dimension_numbers = #tpu.dot_dimension_numbers<[1], [0], [0], [1], [0, 0, 1, 1], [], []>} : vector<8x128xf32>, vector<128x128xbf16>, vector<8x128xf32> -> vector<8x128xf32>
    %c1_34 = arith.constant 1 : index
    %c0_35 = arith.constant 0 : index
    %c0_36 = arith.constant 0 : index
    %62 = vector.load %arg5[%c1_34, %c0_35, %c0_36] : memref<3x1x128xf32, #tpu.memory_space<vmem>>, vector<1x1x128xf32>
    %63 = vector.shape_cast %62 : vector<1x1x128xf32> to vector<1x128xf32>
    %64 = vector.broadcast %63 : vector<1x128xf32> to vector<8x128xf32>
    %65 = arith.mulf %3, %64 : vector<8x128xf32>
    %66 = arith.addf %61, %65 : vector<8x128xf32>
    %cst_37 = arith.constant 5.000000e-01 : f32
    %67 = vector.broadcast %cst_37 : f32 to vector<8x128xf32>
    %68 = arith.mulf %67, %66 : vector<8x128xf32>
    %69 = math.tanh %68 : vector<8x128xf32>
    %70 = math.absf %69 : vector<8x128xf32>
    %cst_38 = arith.constant 1.000000e-30 : f32
    %71 = vector.broadcast %cst_38 : f32 to vector<8x128xf32>
    %72 = arith.maximumf %70, %71 : vector<8x128xf32>
    %73 = math.log %72 : vector<8x128xf32>
    %cst_39 = arith.constant 0.000000e+00 : f32
    %74 = vector.broadcast %cst_39 : f32 to vector<8x128xf32>
    %75 = arith.cmpf olt, %69, %74 : vector<8x128xf32>
    %76 = arith.extui %75 : vector<8x128xi1> to vector<8x128xi32>
    %77 = arith.sitofp %76 : vector<8x128xi32> to vector<8x128xf32>
    %78 = tpu.concatenate %73, %77 in 0 : vector<8x128xf32>, vector<8x128xf32> -> vector<16x128xf32>
    %cst_40 = arith.constant dense<0.000000e+00> : vector<16x128xf32>
    %79 = tpu.matmul %78, %5, %cst_40 {dimension_numbers = #tpu.dot_dimension_numbers<[1], [0], [0], [1], [0, 0, 1, 1], [], []>} : vector<16x128xf32>, vector<128x128xf32>, vector<16x128xf32> -> vector<16x128xf32>
    %cst_41 = arith.constant dense<0.000000e+00> : vector<16x128xf32>
    %80 = tpu.matmul %79, %7, %cst_41 {dimension_numbers = #tpu.dot_dimension_numbers<[1], [0], [0], [1], [0, 0, 1, 1], [], []>} : vector<16x128xf32>, vector<128x128xf32>, vector<16x128xf32> -> vector<16x128xf32>
    %81 = arith.subf %80, %78 : vector<16x128xf32>
    %82 = vector.extract_strided_slice %81 {offsets = [0, 0], sizes = [8, 128], strides = [1, 1]} : vector<16x128xf32> to vector<8x128xf32>
    %cst_42 = arith.constant 0.000000e+00 : f32
    %83 = vector.broadcast %cst_42 : f32 to vector<8x128xf32>
    %84 = arith.minimumf %82, %83 : vector<8x128xf32>
    %85 = vector.extract_strided_slice %81 {offsets = [8, 0], sizes = [8, 128], strides = [1, 1]} : vector<16x128xf32> to vector<8x128xf32>
    %cst_43 = arith.constant 5.000000e-01 : f32
    %86 = vector.broadcast %cst_43 : f32 to vector<8x128xf32>
    %87 = arith.mulf %85, %86 : vector<8x128xf32>
    %88 = math.floor %87 : vector<8x128xf32>
    %cst_44 = arith.constant 2.000000e+00 : f32
    %89 = vector.broadcast %cst_44 : f32 to vector<8x128xf32>
    %90 = arith.mulf %89, %88 : vector<8x128xf32>
    %91 = arith.subf %85, %90 : vector<8x128xf32>
    %cst_45 = arith.constant 2.000000e+00 : f32
    %92 = vector.broadcast %cst_45 : f32 to vector<8x128xf32>
    %93 = arith.mulf %92, %91 : vector<8x128xf32>
    %cst_46 = arith.constant 1.000000e+00 : f32
    %94 = vector.broadcast %cst_46 : f32 to vector<8x128xf32>
    %95 = arith.subf %94, %93 : vector<8x128xf32>
    %cst_47 = arith.constant 0.999499976 : f32
    %96 = vector.broadcast %cst_47 : f32 to vector<8x128xf32>
    %97 = arith.mulf %96, %95 : vector<8x128xf32>
    %98 = math.exp %84 : vector<8x128xf32>
    %99 = arith.mulf %97, %98 : vector<8x128xf32>
    %cst_48 = arith.constant 1.000000e+00 : f32
    %100 = vector.broadcast %cst_48 : f32 to vector<8x128xf32>
    %101 = arith.addf %100, %99 : vector<8x128xf32>
    %102 = math.log %101 : vector<8x128xf32>
    %cst_49 = arith.constant 1.000000e+00 : f32
    %103 = vector.broadcast %cst_49 : f32 to vector<8x128xf32>
    %104 = arith.subf %103, %99 : vector<8x128xf32>
    %105 = math.log %104 : vector<8x128xf32>
    %106 = arith.subf %102, %105 : vector<8x128xf32>
    %c0_50 = arith.constant 0 : index
    %c0_51 = arith.constant 0 : index
    %107 = vector.load %arg11[%c0_50, %c0_51] : memref<8x128xf32, #tpu.memory_space<vmem>>, vector<8x128xf32>
    tpu.vector_store %arg11[%c0_50, %c0_51], %106 {strides = array<i32>} : memref<8x128xf32, #tpu.memory_space<vmem>>, vector<8x128xf32>,
    %c0_52 = arith.constant 0 : index
    %c0_53 = arith.constant 0 : index
    %108 = vector.load %arg11[%c0_52, %c0_53] : memref<8x128xf32, #tpu.memory_space<vmem>>, vector<8x128xf32>
    %c2 = arith.constant 2 : index
    %c0_54 = arith.constant 0 : index
    %c0_55 = arith.constant 0 : index
    %109 = vector.load %arg4[%c2, %c0_54, %c0_55] : memref<3x128x128xbf16, #tpu.memory_space<vmem>>, vector<1x128x128xbf16>
    %110 = vector.shape_cast %109 : vector<1x128x128xbf16> to vector<128x128xbf16>
    %cst_56 = arith.constant dense<0.000000e+00> : vector<8x128xf32>
    %111 = tpu.matmul %108, %110, %cst_56 {dimension_numbers = #tpu.dot_dimension_numbers<[1], [0], [0], [1], [0, 0, 1, 1], [], []>} : vector<8x128xf32>, vector<128x128xbf16>, vector<8x128xf32> -> vector<8x128xf32>
    %c2_57 = arith.constant 2 : index
    %c0_58 = arith.constant 0 : index
    %c0_59 = arith.constant 0 : index
    %112 = vector.load %arg5[%c2_57, %c0_58, %c0_59] : memref<3x1x128xf32, #tpu.memory_space<vmem>>, vector<1x1x128xf32>
    %113 = vector.shape_cast %112 : vector<1x1x128xf32> to vector<1x128xf32>
    %114 = vector.broadcast %113 : vector<1x128xf32> to vector<8x128xf32>
    %115 = arith.mulf %3, %114 : vector<8x128xf32>
    %116 = arith.addf %111, %115 : vector<8x128xf32>
    %cst_60 = arith.constant 5.000000e-01 : f32
    %117 = vector.broadcast %cst_60 : f32 to vector<8x128xf32>
    %118 = arith.mulf %117, %116 : vector<8x128xf32>
    %119 = math.tanh %118 : vector<8x128xf32>
    %120 = math.absf %119 : vector<8x128xf32>
    %cst_61 = arith.constant 1.000000e-30 : f32
    %121 = vector.broadcast %cst_61 : f32 to vector<8x128xf32>
    %122 = arith.maximumf %120, %121 : vector<8x128xf32>
    %123 = math.log %122 : vector<8x128xf32>
    %cst_62 = arith.constant 0.000000e+00 : f32
    %124 = vector.broadcast %cst_62 : f32 to vector<8x128xf32>
    %125 = arith.cmpf olt, %119, %124 : vector<8x128xf32>
    %126 = arith.extui %125 : vector<8x128xi1> to vector<8x128xi32>
    %127 = arith.sitofp %126 : vector<8x128xi32> to vector<8x128xf32>
    %128 = tpu.concatenate %123, %127 in 0 : vector<8x128xf32>, vector<8x128xf32> -> vector<16x128xf32>
    %cst_63 = arith.constant dense<0.000000e+00> : vector<16x128xf32>
    %129 = tpu.matmul %128, %5, %cst_63 {dimension_numbers = #tpu.dot_dimension_numbers<[1], [0], [0], [1], [0, 0, 1, 1], [], []>} : vector<16x128xf32>, vector<128x128xf32>, vector<16x128xf32> -> vector<16x128xf32>
    %cst_64 = arith.constant dense<0.000000e+00> : vector<16x128xf32>
    %130 = tpu.matmul %129, %7, %cst_64 {dimension_numbers = #tpu.dot_dimension_numbers<[1], [0], [0], [1], [0, 0, 1, 1], [], []>} : vector<16x128xf32>, vector<128x128xf32>, vector<16x128xf32> -> vector<16x128xf32>
    %131 = arith.subf %130, %128 : vector<16x128xf32>
    %132 = vector.extract_strided_slice %131 {offsets = [0, 0], sizes = [8, 128], strides = [1, 1]} : vector<16x128xf32> to vector<8x128xf32>
    %cst_65 = arith.constant 0.000000e+00 : f32
    %133 = vector.broadcast %cst_65 : f32 to vector<8x128xf32>
    %134 = arith.minimumf %132, %133 : vector<8x128xf32>
    %135 = vector.extract_strided_slice %131 {offsets = [8, 0], sizes = [8, 128], strides = [1, 1]} : vector<16x128xf32> to vector<8x128xf32>
    %cst_66 = arith.constant 5.000000e-01 : f32
    %136 = vector.broadcast %cst_66 : f32 to vector<8x128xf32>
    %137 = arith.mulf %135, %136 : vector<8x128xf32>
    %138 = math.floor %137 : vector<8x128xf32>
    %cst_67 = arith.constant 2.000000e+00 : f32
    %139 = vector.broadcast %cst_67 : f32 to vector<8x128xf32>
    %140 = arith.mulf %139, %138 : vector<8x128xf32>
    %141 = arith.subf %135, %140 : vector<8x128xf32>
    %cst_68 = arith.constant 2.000000e+00 : f32
    %142 = vector.broadcast %cst_68 : f32 to vector<8x128xf32>
    %143 = arith.mulf %142, %141 : vector<8x128xf32>
    %cst_69 = arith.constant 1.000000e+00 : f32
    %144 = vector.broadcast %cst_69 : f32 to vector<8x128xf32>
    %145 = arith.subf %144, %143 : vector<8x128xf32>
    %cst_70 = arith.constant 0.999499976 : f32
    %146 = vector.broadcast %cst_70 : f32 to vector<8x128xf32>
    %147 = arith.mulf %146, %145 : vector<8x128xf32>
    %148 = math.exp %134 : vector<8x128xf32>
    %149 = arith.mulf %147, %148 : vector<8x128xf32>
    %cst_71 = arith.constant 1.000000e+00 : f32
    %150 = vector.broadcast %cst_71 : f32 to vector<8x128xf32>
    %151 = arith.addf %150, %149 : vector<8x128xf32>
    %152 = math.log %151 : vector<8x128xf32>
    %cst_72 = arith.constant 1.000000e+00 : f32
    %153 = vector.broadcast %cst_72 : f32 to vector<8x128xf32>
    %154 = arith.subf %153, %149 : vector<8x128xf32>
    %155 = math.log %154 : vector<8x128xf32>
    %156 = arith.subf %152, %155 : vector<8x128xf32>
    %c0_73 = arith.constant 0 : index
    %c0_74 = arith.constant 0 : index
    %157 = vector.load %arg11[%c0_73, %c0_74] : memref<8x128xf32, #tpu.memory_space<vmem>>, vector<8x128xf32>
    tpu.vector_store %arg11[%c0_73, %c0_74], %156 {strides = array<i32>} : memref<8x128xf32, #tpu.memory_space<vmem>>, vector<8x128xf32>,
    %c0_i32_75 = arith.constant 0 : i32
    %158 = arith.cmpi eq, %arg1, %c0_i32_75 : i32
    %159 = arith.extui %158 : i1 to i32
    %c0_i32_76 = arith.constant 0 : i32
    %160 = arith.cmpi ne, %159, %c0_i32_76 : i32
    scf.if %160 {
      %c0_77 = arith.constant 0 : index
      %c0_78 = arith.constant 0 : index
      %161 = vector.load %arg11[%c0_77, %c0_78] : memref<8x128xf32, #tpu.memory_space<vmem>>, vector<8x128xf32>
      %c0_79 = arith.constant 0 : index
      %c0_80 = arith.constant 0 : index
      %162 = vector.load %arg8[%c0_79, %c0_80] : memref<128x128xbf16, #tpu.memory_space<vmem>>, vector<128x128xbf16>
      %cst_81 = arith.constant dense<0.000000e+00> : vector<8x128xf32>
      %163 = tpu.matmul %161, %162, %cst_81 {dimension_numbers = #tpu.dot_dimension_numbers<[1], [0], [0], [1], [0, 0, 1, 1], [], []>} : vector<8x128xf32>, vector<128x128xbf16>, vector<8x128xf32> -> vector<8x128xf32>
      %c0_82 = arith.constant 0 : index
      %c0_83 = arith.constant 0 : index
      %164 = vector.load %arg2[%c0_82, %c0_83] : memref<8x128xf32, #tpu.memory_space<vmem>>, vector<8x128xf32>
      %c0_84 = arith.constant 0 : index
      %c0_85 = arith.constant 0 : index
      %165 = vector.load %arg9[%c0_84, %c0_85] : memref<1x128xf32, #tpu.memory_space<vmem>>, vector<1x128xf32>
      %166 = vector.broadcast %165 : vector<1x128xf32> to vector<8x128xf32>
      %167 = arith.mulf %164, %166 : vector<8x128xf32>
      %168 = arith.addf %163, %167 : vector<8x128xf32>
      %cst_86 = arith.constant 0.000000e+00 : f32
      %169 = vector.broadcast %cst_86 : f32 to vector<8x128xf32>
      %170 = arith.subf %169, %168 : vector<8x128xf32>
      %171 = math.exp %170 : vector<8x128xf32>
      %cst_87 = arith.constant 1.000000e+00 : f32
      %172 = vector.broadcast %cst_87 : f32 to vector<8x128xf32>
      %173 = arith.addf %172, %171 : vector<8x128xf32>
      %174 = tpu.reciprocal %173 {approx = true} : vector<8x128xf32> -> vector<8x128xf32>
      %c0_88 = arith.constant 0 : index
      %c0_89 = arith.constant 0 : index
      %175 = vector.load %arg10[%c0_88, %c0_89] : memref<8x128xf32, #tpu.memory_space<vmem>>, vector<8x128xf32>
      tpu.vector_store %arg10[%c0_88, %c0_89], %174 {strides = array<i32>} : memref<8x128xf32, #tpu.memory_space<vmem>>, vector<8x128xf32>,
    } else {
    }
    return
  }
  func.func @transform_0(%arg0: i32, %arg1: i32) -> (i32, i32) {
    %c0_i32 = arith.constant 0 : i32
    %c0_i32_0 = arith.constant 0 : i32
    return %arg0, %c0_i32 : i32, i32
  }
  func.func @transform_1(%arg0: i32, %arg1: i32) -> (i32, i32) {
    %c0_i32 = arith.constant 0 : i32
    %c0_i32_0 = arith.constant 0 : i32
    return %arg0, %c0_i32 : i32, i32
  }
  func.func @transform_2(%arg0: i32, %arg1: i32) -> (i32, i32, i32) {
    %c0_i32 = arith.constant 0 : i32
    %c0_i32_0 = arith.constant 0 : i32
    %c0_i32_1 = arith.constant 0 : i32
    return %arg1, %c0_i32, %c0_i32_0 : i32, i32, i32
  }
  func.func @transform_3(%arg0: i32, %arg1: i32) -> (i32, i32, i32) {
    %c0_i32 = arith.constant 0 : i32
    %c0_i32_0 = arith.constant 0 : i32
    %c0_i32_1 = arith.constant 0 : i32
    return %arg1, %c0_i32, %c0_i32_0 : i32, i32, i32
  }
  func.func @transform_4(%arg0: i32, %arg1: i32) -> (i32, i32) {
    %c0_i32 = arith.constant 0 : i32
    %c0_i32_0 = arith.constant 0 : i32
    %c0_i32_1 = arith.constant 0 : i32
    return %c0_i32, %c0_i32_0 : i32, i32
  }
  func.func @transform_5(%arg0: i32, %arg1: i32) -> (i32, i32) {
    %c0_i32 = arith.constant 0 : i32
    %c0_i32_0 = arith.constant 0 : i32
    %c0_i32_1 = arith.constant 0 : i32
    return %c0_i32, %c0_i32_0 : i32, i32
  }
  func.func @transform_6(%arg0: i32, %arg1: i32) -> (i32, i32) {
    %c0_i32 = arith.constant 0 : i32
    %c0_i32_0 = arith.constant 0 : i32
    %c0_i32_1 = arith.constant 0 : i32
    return %c0_i32, %c0_i32_0 : i32, i32
  }
  func.func @transform_7(%arg0: i32, %arg1: i32) -> (i32, i32) {
    %c0_i32 = arith.constant 0 : i32
    %c0_i32_0 = arith.constant 0 : i32
    %c0_i32_1 = arith.constant 0 : i32
    return %c0_i32, %c0_i32_0 : i32, i32
  }
  func.func @transform_8(%arg0: i32, %arg1: i32) -> (i32, i32) {
    %c0_i32 = arith.constant 0 : i32
    %c0_i32_0 = arith.constant 0 : i32
    return %arg0, %c0_i32 : i32, i32
  }
}

</mosaic_0001>

<llo_original>
// kernel: tpu_custom_call.1
$region0: #{tpu_custom_call.1}
  #allocation0 [shape = 'u32[]', space=smem, size = 0x4, offset = 0x4, fixed_abs, tag = 'smem constant byte address 0x4 - core index']
  #allocation1 [shape = 'u32[144,128]{1,0:T(1,128)}', space=vmem, size = 0x12000, scoped, tag = 'internal scratch']
  #allocation2 [shape = 'f32[8,128]{1,0:T(8,128)}', space=vmem, size = 0x1000, scoped, tag = 'scratch operand']
  %s0 = inlined_call_operand.hbm [shape: f32[8,128], index: 0, kind: input, shape index: {}]
  %s1 = inlined_call_operand.hbm [shape: f32[8,128], index: 1, kind: input, shape index: {}]
  %s2 = inlined_call_operand.hbm [shape: bf16[3,128,128], index: 2, kind: input, shape index: {}]
  %s3 = inlined_call_operand.vmem [shape: f32[3,1,128], index: 3, kind: input, shape index: {}]
  %s4 = inlined_call_operand.hbm [shape: bf16[128,128], index: 4, kind: input, shape index: {}]
  %s5 = inlined_call_operand.hbm [shape: bf16[128,128], index: 5, kind: input, shape index: {}]
  %s6 = inlined_call_operand.hbm [shape: bf16[128,128], index: 6, kind: input, shape index: {}]
  %s7 = inlined_call_operand.vmem [shape: f32[1,128], index: 7, kind: input, shape index: {}]
  %s8 = inlined_call_operand.hbm [shape: f32[8,128], index: 8, kind: output, shape index: {}]
  %s9 = sld [smem:[#allocation0]]
  $region74: #{tpu_custom_call.1} parent=0
    _
  %s11 = ssub.s32 1, %s9
  %s12 = scalar_select 0, %s11, %s9
  $region1: #{tpu_custom_call.1} parent=0
    #allocation3 [shape = 'u8[4096]{0}', space=vmem, size = 0x1000, scoped, tag = 'input window, operand 0, single buffered']
    #allocation4 [shape = 's32[1]{0}', space=sflag, size = 0x4, scoped, tag = 'scoped memory for tpu_custom_call.1']
    #allocation5 [shape = 's32[1]{0}', space=sflag, size = 0x4, scoped, tag = 'scoped memory for tpu_custom_call.1']
    #allocation6 [shape = 'u8[4096]{0}', space=vmem, size = 0x1000, scoped, tag = 'input window, operand 1, single buffered']
    #allocation7 [shape = 's32[1]{0}', space=sflag, size = 0x4, scoped, tag = 'scoped memory for tpu_custom_call.1']
    #allocation8 [shape = 'u8[98304]{0}', space=vmem, size = 0x18000, scoped, tag = 'input window, operand 2, single buffered']
    #allocation9 [shape = 'u8[32768]{0}', space=vmem, size = 0x8000, scoped, tag = 'input window, operand 4, single buffered']
    #allocation10 [shape = 's32[1]{0}', space=sflag, size = 0x4, scoped, tag = 'scoped memory for tpu_custom_call.1']
    #allocation11 [shape = 'u8[32768]{0}', space=vmem, size = 0x8000, scoped, tag = 'input window, operand 5, single buffered']
    #allocation12 [shape = 'u8[32768]{0}', space=vmem, size = 0x8000, scoped, tag = 'input window, operand 6, single buffered']
    #allocation13 [shape = 's32[1]{0}', space=sflag, size = 0x4, scoped, tag = 'scoped memory for tpu_custom_call.1']
    #allocation14 [shape = 'u8[4096]{0}', space=vmem, size = 0x1000, scoped, tag = 'output window, operand 0, single buffered']
    %13 = vsyncpa [#allocation4], 0
    %14 = vsyncpa [#allocation7], 0
    %15 = vsyncpa [#allocation10], 0
    %16 = vsyncpa [#allocation13], 0
    %17 = vsyncpa [#allocation5], 0
    // Predicated region
    $region2: #{tpu_custom_call.1} parent=1 // pred_check
      _
    $region3: #{tpu_custom_call.1} parent=1 // pred_check_branch
      %19 = sbr.rel (0) target = $region5
    $region4: #{tpu_custom_call.1} parent=1 // pred_region
      %s21 = ssub.s32 128, 128
      %22 = vsyncadd [#allocation4], %s21
      %s24 = sshll.u32 [#allocation3], 4
      %s25 = int_to_ptr.vmem [resolvable:$true] %s24
      %27 = dma.hbm_to_vmem [thread:$0]  %s0, 128, %s25, [#allocation4]
    $region5: #{tpu_custom_call.1} parent=1 // pred_fallthru
      _
    // Predicated region
    $region6: #{tpu_custom_call.1} parent=1 // pred_check
      _
    $region7: #{tpu_custom_call.1} parent=1 // pred_check_branch
      %29 = sbr.rel (0) target = $region9
    $region8: #{tpu_custom_call.1} parent=1 // pred_region
      %s31 = ssub.s32 128, 128
      %32 = vsyncadd [#allocation7], %s31
      %s34 = sshll.u32 [#allocation6], 4
      %s35 = int_to_ptr.vmem [resolvable:$true] %s34
      %37 = dma.hbm_to_vmem [thread:$0]  %s1, 128, %s35, [#allocation7]
    $region9: #{tpu_custom_call.1} parent=1 // pred_fallthru
      _
    // Predicated region
    $region10: #{tpu_custom_call.1} parent=1 // pred_check
      _
    $region11: #{tpu_custom_call.1} parent=1 // pred_check_branch
      %39 = sbr.rel (0) target = $region13
    $region12: #{tpu_custom_call.1} parent=1 // pred_region
      %s41 = ssub.s32 3072, 3072
      %42 = vsyncadd [#allocation7], %s41
      %s43 = sshll.u32 [#allocation8], 4
      %s44 = int_to_ptr.vmem [resolvable:$true] %s43
      %49 = dma.hbm_to_vmem [thread:$0]  %s2, 3072, %s44, [#allocation7], 64, 64, 4
    $region13: #{tpu_custom_call.1} parent=1 // pred_fallthru
      _
    // Predicated region
    $region14: #{tpu_custom_call.1} parent=1 // pred_check
      _
    $region15: #{tpu_custom_call.1} parent=1 // pred_check_branch
      %51 = sbr.rel (0) target = $region17
    $region16: #{tpu_custom_call.1} parent=1 // pred_region
      _
    $region17: #{tpu_custom_call.1} parent=1 // pred_fallthru
      _
    // Predicated region
    $region18: #{tpu_custom_call.1} parent=1 // pred_check
      _
    $region19: #{tpu_custom_call.1} parent=1 // pred_check_branch
      %53 = sbr.rel (0) target = $region21
    $region20: #{tpu_custom_call.1} parent=1 // pred_region
      %s55 = ssub.s32 1024, 1024
      %56 = vsyncadd [#allocation10], %s55
      %s57 = sshll.u32 [#allocation9], 4
      %s58 = int_to_ptr.vmem [resolvable:$true] %s57
      %63 = dma.hbm_to_vmem [thread:$0]  %s4, 1024, %s58, [#allocation10], 64, 64, 4
    $region21: #{tpu_custom_call.1} parent=1 // pred_fallthru
      _
    // Predicated region
    $region22: #{tpu_custom_call.1} parent=1 // pred_check
      _
    $region23: #{tpu_custom_call.1} parent=1 // pred_check_branch
      %65 = sbr.rel (0) target = $region25
    $region24: #{tpu_custom_call.1} parent=1 // pred_region
      %s67 = ssub.s32 1024, 1024
      %68 = vsyncadd [#allocation10], %s67
      %s69 = sshll.u32 [#allocation11], 4
      %s70 = int_to_ptr.vmem [resolvable:$true] %s69
      %75 = dma.hbm_to_vmem [thread:$0]  %s5, 1024, %s70, [#allocation10], 64, 64, 4
    $region25: #{tpu_custom_call.1} parent=1 // pred_fallthru
      _
    // Predicated region
    $region26: #{tpu_custom_call.1} parent=1 // pred_check
      _
    $region27: #{tpu_custom_call.1} parent=1 // pred_check_branch
      %77 = sbr.rel (0) target = $region29
    $region28: #{tpu_custom_call.1} parent=1 // pred_region
      %s79 = ssub.s32 1024, 1024
      %80 = vsyncadd [#allocation13], %s79
      %s81 = sshll.u32 [#allocation12], 4
      %s82 = int_to_ptr.vmem [resolvable:$true] %s81
      %87 = dma.hbm_to_vmem [thread:$0]  %s6, 1024, %s82, [#allocation13], 64, 64, 4
    $region29: #{tpu_custom_call.1} parent=1 // pred_fallthru
      _
    // Predicated region
    $region30: #{tpu_custom_call.1} parent=1 // pred_check
      _
    $region31: #{tpu_custom_call.1} parent=1 // pred_check_branch
      %89 = sbr.rel (0) target = $region33
    $region32: #{tpu_custom_call.1} parent=1 // pred_region
      _
    $region33: #{tpu_custom_call.1} parent=1 // pred_fallthru
      _
    // Predicated region
    $region34: #{tpu_custom_call.1} parent=1 // pred_check
      _
    $region35: #{tpu_custom_call.1} parent=1 // pred_check_branch
      %91 = sbr.rel (0) target = $region37
    $region36: #{tpu_custom_call.1} parent=1 // pred_region
      %92 = dma.done [#allocation4], 128
    $region37: #{tpu_custom_call.1} parent=1 // pred_fallthru
      _
    // Predicated region
    $region38: #{tpu_custom_call.1} parent=1 // pred_check
      _
    $region39: #{tpu_custom_call.1} parent=1 // pred_check_branch
      %94 = sbr.rel (0) target = $region41
    $region40: #{tpu_custom_call.1} parent=1 // pred_region
      %95 = dma.done [#allocation7], 128
    $region41: #{tpu_custom_call.1} parent=1 // pred_fallthru
      _
    // Predicated region
    $region42: #{tpu_custom_call.1} parent=1 // pred_check
      _
    $region43: #{tpu_custom_call.1} parent=1 // pred_check_branch
      %97 = sbr.rel (0) target = $region45
    $region44: #{tpu_custom_call.1} parent=1 // pred_region
      %98 = dma.done [#allocation7], 3072
    $region45: #{tpu_custom_call.1} parent=1 // pred_fallthru
      _
    // Predicated region
    $region46: #{tpu_custom_call.1} parent=1 // pred_check
      _
    $region47: #{tpu_custom_call.1} parent=1 // pred_check_branch
      %100 = sbr.rel (0) target = $region49
    $region48: #{tpu_custom_call.1} parent=1 // pred_region
      %101 = dma.done [#allocation10], 1024
    $region49: #{tpu_custom_call.1} parent=1 // pred_fallthru
      _
    // Predicated region
    $region50: #{tpu_custom_call.1} parent=1 // pred_check
      _
    $region51: #{tpu_custom_call.1} parent=1 // pred_check_branch
      %103 = sbr.rel (0) target = $region53
    $region52: #{tpu_custom_call.1} parent=1 // pred_region
      %104 = dma.done [#allocation10], 1024
    $region53: #{tpu_custom_call.1} parent=1 // pred_fallthru
      _
    // Predicated region
    $region54: #{tpu_custom_call.1} parent=1 // pred_check
      _
    $region55: #{tpu_custom_call.1} parent=1 // pred_check_branch
      %106 = sbr.rel (0) target = $region57
    $region56: #{tpu_custom_call.1} parent=1 // pred_region
      %107 = dma.done [#allocation13], 1024
    $region57: #{tpu_custom_call.1} parent=1 // pred_fallthru
      _
    %p109 = scmp.eq.s32.totalorder 0, 0
    // Predicated region
    $region58: #{tpu_custom_call.1} parent=1 // pred_check
      %p110 = pneg %p109
    $region59: #{tpu_custom_call.1} parent=1 // pred_check_branch
      %112 = sbr.rel (%p110) target = $region61
    $region60: #{tpu_custom_call.1} parent=1 // pred_region
      %113 = vst [vmem:[#allocation2] sm:$0xff] 0.0
    $region61: #{tpu_custom_call.1} parent=1 // pred_fallthru
      _
    %v114 = vld [vmem:[#allocation6] sm:$0xff]
    %v115 = vld [vmem:[#allocation9] sm:$0xf]
    %v116 = vld [vmem:[#allocation9 + $0x4] sm:$0xf]
    %v117 = vld [vmem:[#allocation9 + $0x8] sm:$0xf]
    %v118 = vld [vmem:[#allocation9 + $0xc] sm:$0xf]
    %v119 = vld [vmem:[#allocation9 + $0x10] sm:$0xf]
    %v120 = vld [vmem:[#allocation9 + $0x14] sm:$0xf]
    %v121 = vld [vmem:[#allocation9 + $0x18] sm:$0xf]
    %v122 = vld [vmem:[#allocation9 + $0x1c] sm:$0xf]
    %v123 = vld [vmem:[#allocation9 + $0x20] sm:$0xf]
    %v124 = vld [vmem:[#allocation9 + $0x24] sm:$0xf]
    %v125 = vld [vmem:[#allocation9 + $0x28] sm:$0xf]
    %v126 = vld [vmem:[#allocation9 + $0x2c] sm:$0xf]
    %v127 = vld [vmem:[#allocation9 + $0x30] sm:$0xf]
    %v128 = vld [vmem:[#allocation9 + $0x34] sm:$0xf]
    %v129 = vld [vmem:[#allocation9 + $0x38] sm:$0xf]
    %v130 = vld [vmem:[#allocation9 + $0x3c] sm:$0xf]
    %v131 = vunpack.c.l.bf16 %v115
    %v132 = vunpack.c.l.bf16 %v116
    %v133 = vunpack.c.l.bf16 %v117
    %v134 = vunpack.c.l.bf16 %v118
    %v135 = vunpack.c.l.bf16 %v119
    %v136 = vunpack.c.l.bf16 %v120
    %v137 = vunpack.c.l.bf16 %v121
    %v138 = vunpack.c.l.bf16 %v122
    %v139 = vunpack.c.l.bf16 %v123
    %v140 = vunpack.c.l.bf16 %v124
    %v141 = vunpack.c.l.bf16 %v125
    %v142 = vunpack.c.l.bf16 %v126
    %v143 = vunpack.c.l.bf16 %v127
    %v144 = vunpack.c.l.bf16 %v128
    %v145 = vunpack.c.l.bf16 %v129
    %v146 = vunpack.c.l.bf16 %v130
    %v147 = vld [vmem:[#allocation11] sm:$0xf]
    %v148 = vld [vmem:[#allocation11 + $0x4] sm:$0xf]
    %v149 = vld [vmem:[#allocation11 + $0x8] sm:$0xf]
    %v150 = vld [vmem:[#allocation11 + $0xc] sm:$0xf]
    %v151 = vld [vmem:[#allocation11 + $0x10] sm:$0xf]
    %v152 = vld [vmem:[#allocation11 + $0x14] sm:$0xf]
    %v153 = vld [vmem:[#allocation11 + $0x18] sm:$0xf]
    %v154 = vld [vmem:[#allocation11 + $0x1c] sm:$0xf]
    %v155 = vld [vmem:[#allocation11 + $0x20] sm:$0xf]
    %v156 = vld [vmem:[#allocation11 + $0x24] sm:$0xf]
    %v157 = vld [vmem:[#allocation11 + $0x28] sm:$0xf]
    %v158 = vld [vmem:[#allocation11 + $0x2c] sm:$0xf]
    %v159 = vld [vmem:[#allocation11 + $0x30] sm:$0xf]
    %v160 = vld [vmem:[#allocation11 + $0x34] sm:$0xf]
    %v161 = vld [vmem:[#allocation11 + $0x38] sm:$0xf]
    %v162 = vld [vmem:[#allocation11 + $0x3c] sm:$0xf]
    %v163 = vunpack.c.l.bf16 %v147
    %v164 = vunpack.c.l.bf16 %v148
    %v165 = vunpack.c.l.bf16 %v149
    %v166 = vunpack.c.l.bf16 %v150
    %v167 = vunpack.c.l.bf16 %v151
    %v168 = vunpack.c.l.bf16 %v152
    %v169 = vunpack.c.l.bf16 %v153
    %v170 = vunpack.c.l.bf16 %v154
    %v171 = vunpack.c.l.bf16 %v155
    %v172 = vunpack.c.l.bf16 %v156
    %v173 = vunpack.c.l.bf16 %v157
    %v174 = vunpack.c.l.bf16 %v158
    %v175 = vunpack.c.l.bf16 %v159
    %v176 = vunpack.c.l.bf16 %v160
    %v177 = vunpack.c.l.bf16 %v161
    %v178 = vunpack.c.l.bf16 %v162
    %v179 = vld [vmem:[#allocation2] sm:$0xff]
    %v180 = vld [vmem:[#allocation8] sm:$0xf]
    %v181 = vld [vmem:[#allocation8 + $0x4] sm:$0xf]
    %v182 = vld [vmem:[#allocation8 + $0x8] sm:$0xf]
    %v183 = vld [vmem:[#allocation8 + $0xc] sm:$0xf]
    %v184 = vld [vmem:[#allocation8 + $0x10] sm:$0xf]
    %v185 = vld [vmem:[#allocation8 + $0x14] sm:$0xf]
    %v186 = vld [vmem:[#allocation8 + $0x18] sm:$0xf]
    %v187 = vld [vmem:[#allocation8 + $0x1c] sm:$0xf]
    %v188 = vld [vmem:[#allocation8 + $0x20] sm:$0xf]
    %v189 = vld [vmem:[#allocation8 + $0x24] sm:$0xf]
    %v190 = vld [vmem:[#allocation8 + $0x28] sm:$0xf]
    %v191 = vld [vmem:[#allocation8 + $0x2c] sm:$0xf]
    %v192 = vld [vmem:[#allocation8 + $0x30] sm:$0xf]
    %v193 = vld [vmem:[#allocation8 + $0x34] sm:$0xf]
    %v194 = vld [vmem:[#allocation8 + $0x38] sm:$0xf]
    %v195 = vld [vmem:[#allocation8 + $0x3c] sm:$0xf]
    %v196 = vld [vmem:[%s3] sm:$0x1]
    %v198 = vlaneseq
    %v199 = vshrl.u32 %v198, 7
    %v200 = vsub.s32 0, %v199
    %v201 = vrot.slane %v196, %v200
    %v203 = vmul.f32 %v114, %v201
    %v220 = vunpack.c.l.b16 %v180
    %v221 = vunpack.c.l.b16 %v181
    %v222 = vunpack.c.l.b16 %v182
    %v223 = vunpack.c.l.b16 %v183
    %v224 = vunpack.c.l.b16 %v184
    %v225 = vunpack.c.l.b16 %v185
    %v226 = vunpack.c.l.b16 %v186
    %v227 = vunpack.c.l.b16 %v187
    %v228 = vunpack.c.l.b16 %v188
    %v229 = vunpack.c.l.b16 %v189
    %v230 = vunpack.c.l.b16 %v190
    %v231 = vunpack.c.l.b16 %v191
    %v232 = vunpack.c.l.b16 %v192
    %v233 = vunpack.c.l.b16 %v193
    %v234 = vunpack.c.l.b16 %v194
    %v235 = vunpack.c.l.b16 %v195
    %v236 = vpack.c.b16 %v221, %v220
    %v237 = vpack.c.b16 %v223, %v222
    %v238 = vpack.c.b16 %v225, %v224
    %v239 = vpack.c.b16 %v227, %v226
    %v240 = vpack.c.b16 %v229, %v228
    %v241 = vpack.c.b16 %v231, %v230
    %v242 = vpack.c.b16 %v233, %v232
    %v243 = vpack.c.b16 %v235, %v234
    %252 = vmatprep.subr.bf16.mxu0 0
    %253 = vmatpush1.bf16.msra.mxu0 %v243
    %254 = vmatprep.subr.bf16.mxu0 0
    %255 = vmatpush1.bf16.msra.mxu0 %v242
    %256 = vmatprep.subr.bf16.mxu0 0
    %257 = vmatpush1.bf16.msra.mxu0 %v241
    %258 = vmatprep.subr.bf16.mxu0 0
    %259 = vmatpush1.bf16.msra.mxu0 %v240
    %260 = vmatprep.subr.bf16.mxu0 0
    %261 = vmatpush1.bf16.msra.mxu0 %v239
    %262 = vmatprep.subr.bf16.mxu0 0
    %263 = vmatpush1.bf16.msra.mxu0 %v238
    %264 = vmatprep.subr.bf16.mxu0 0
    %265 = vmatpush1.bf16.msra.mxu0 %v237
    %266 = vmatprep.subr.bf16.mxu0 0
    %267 = vmatpush1.bf16.msra.mxu0 %v236
    %268 = vmatprep.subr.bf16.mxu0 0
    %269 = vmatpush2.bf16.msra.mxu0 0
    %270 = vmatprep.subr.bf16.mxu0 0
    %271 = vmatpush2.bf16.msra.mxu0 0
    %272 = vmatprep.subr.bf16.mxu0 0
    %273 = vmatpush2.bf16.msra.mxu0 0
    %274 = vmatprep.subr.bf16.mxu0 0
    %275 = vmatpush2.bf16.msra.mxu0 0
    %276 = vmatprep.subr.bf16.mxu0 0
    %277 = vmatpush2.bf16.msra.mxu0 0
    %278 = vmatprep.subr.bf16.mxu0 0
    %279 = vmatpush2.bf16.msra.mxu0 0
    %280 = vmatprep.subr.bf16.mxu0 0
    %281 = vmatpush2.bf16.msra.mxu0 0
    %282 = vmatprep.subr.bf16.mxu0 0
    %283 = vmatpush2.bf16.msra.mxu0 0
    %284 = vmatprep.mubr.f32.mxu0 0.0
    %285 = vmatmul.mubr.f32.gmra.mxu0 %v179
    %v286 = vpop.f32.mrf.mxu0
    %v287 = vadd.f32 %v203, %v286
    %v288 = vpop.f32.mrf.mxu0
    %289 = vdwg.mxu0
    %v290 = vmul.f32 %v287, 0.5
    %v291 = vtanh.pop %v290
    %v292 = vand.u32 2147483647, %v291
    %v293 = vmax.f32 %v292, 1e-30
    %v294 = vlog2.pop %v293
    %v295 = vmul.f32 %v294, 0.6931472
    %vm296 = vcmp.lt.f32.partialorder %v291, 0.0
    %v297 = vsel %vm296, 1, 0
    %v298 = vcvt.s32.f32 %v297
    %299 = vmatprep.subr.mxu0 0.0
    %300 = vmatpush1.msra.mxu0 %v146
    %301 = vmatprep.subr.mxu0 0.0
    %302 = vmatpush1.msra.mxu0 %v145
    %303 = vmatprep.subr.mxu0 0.0
    %304 = vmatpush1.msra.mxu0 %v144
    %305 = vmatprep.subr.mxu0 0.0
    %306 = vmatpush1.msra.mxu0 %v143
    %307 = vmatprep.subr.mxu0 0.0
    %308 = vmatpush1.msra.mxu0 %v142
    %309 = vmatprep.subr.mxu0 0.0
    %310 = vmatpush1.msra.mxu0 %v141
    %311 = vmatprep.subr.mxu0 0.0
    %312 = vmatpush1.msra.mxu0 %v140
    %313 = vmatprep.subr.mxu0 0.0
    %314 = vmatpush1.msra.mxu0 %v139
    %315 = vmatprep.subr.mxu0 0.0
    %316 = vmatpush1.msra.mxu0 %v138
    %317 = vmatprep.subr.mxu0 0.0
    %318 = vmatpush1.msra.mxu0 %v137
    %319 = vmatprep.subr.mxu0 0.0
    %320 = vmatpush1.msra.mxu0 %v136
    %321 = vmatprep.subr.mxu0 0.0
    %322 = vmatpush1.msra.mxu0 %v135
    %323 = vmatprep.subr.mxu0 0.0
    %324 = vmatpush1.msra.mxu0 %v134
    %325 = vmatprep.subr.mxu0 0.0
    %326 = vmatpush1.msra.mxu0 %v133
    %327 = vmatprep.subr.mxu0 0.0
    %328 = vmatpush1.msra.mxu0 %v132
    %329 = vmatprep.subr.mxu0 0.0
    %330 = vmatpush1.msra.mxu0 %v131
    %331 = vmatprep.subr.mxu0 0.0
    %332 = vmatpush2.msra.mxu0 0.0
    %333 = vmatprep.subr.mxu0 0.0
    %334 = vmatpush2.msra.mxu0 0.0
    %335 = vmatprep.subr.mxu0 0.0
    %336 = vmatpush2.msra.mxu0 0.0
    %337 = vmatprep.subr.mxu0 0.0
    %338 = vmatpush2.msra.mxu0 0.0
    %339 = vmatprep.subr.mxu0 0.0
    %340 = vmatpush2.msra.mxu0 0.0
    %341 = vmatprep.subr.mxu0 0.0
    %342 = vmatpush2.msra.mxu0 0.0
    %343 = vmatprep.subr.mxu0 0.0
    %344 = vmatpush2.msra.mxu0 0.0
    %345 = vmatprep.subr.mxu0 0.0
    %346 = vmatpush2.msra.mxu0 0.0
    %347 = vmatprep.subr.mxu0 0.0
    %348 = vmatpush2.msra.mxu0 0.0
    %349 = vmatprep.subr.mxu0 0.0
    %350 = vmatpush2.msra.mxu0 0.0
    %351 = vmatprep.subr.mxu0 0.0
    %352 = vmatpush2.msra.mxu0 0.0
    %353 = vmatprep.subr.mxu0 0.0
    %354 = vmatpush2.msra.mxu0 0.0
    %355 = vmatprep.subr.mxu0 0.0
    %356 = vmatpush2.msra.mxu0 0.0
    %357 = vmatprep.subr.mxu0 0.0
    %358 = vmatpush2.msra.mxu0 0.0
    %359 = vmatprep.subr.mxu0 0.0
    %360 = vmatpush2.msra.mxu0 0.0
    %361 = vmatprep.subr.mxu0 0.0
    %362 = vmatpush2.msra.mxu0 0.0
    %363 = vmatprep.mubr.f32.mxu0 0.0
    %364 = vmatmul.mubr.f32.gmra.mxu0 %v295
    %v365 = vpop.f32.mrf.mxu0
    %v366 = vadd.f32 0.0, %v365
    %v367 = vpop.f32.mrf.mxu0
    %368 = vmatprep.mubr.f32.mxu0 0.0
    %369 = vmatmul.mubr.f32.gmra.mxu0 %v298
    %v370 = vpop.f32.mrf.mxu0
    %v371 = vadd.f32 0.0, %v370
    %v372 = vpop.f32.mrf.mxu0
    %373 = vdwg.mxu0
    %374 = vmatprep.subr.mxu0 0.0
    %375 = vmatpush1.msra.mxu0 %v178
    %376 = vmatprep.subr.mxu0 0.0
    %377 = vmatpush1.msra.mxu0 %v177
    %378 = vmatprep.subr.mxu0 0.0
    %379 = vmatpush1.msra.mxu0 %v176
    %380 = vmatprep.subr.mxu0 0.0
    %381 = vmatpush1.msra.mxu0 %v175
    %382 = vmatprep.subr.mxu0 0.0
    %383 = vmatpush1.msra.mxu0 %v174
    %384 = vmatprep.subr.mxu0 0.0
    %385 = vmatpush1.msra.mxu0 %v173
    %386 = vmatprep.subr.mxu0 0.0
    %387 = vmatpush1.msra.mxu0 %v172
    %388 = vmatprep.subr.mxu0 0.0
    %389 = vmatpush1.msra.mxu0 %v171
    %390 = vmatprep.subr.mxu0 0.0
    %391 = vmatpush1.msra.mxu0 %v170
    %392 = vmatprep.subr.mxu0 0.0
    %393 = vmatpush1.msra.mxu0 %v169
    %394 = vmatprep.subr.mxu0 0.0
    %395 = vmatpush1.msra.mxu0 %v168
    %396 = vmatprep.subr.mxu0 0.0
    %397 = vmatpush1.msra.mxu0 %v167
    %398 = vmatprep.subr.mxu0 0.0
    %399 = vmatpush1.msra.mxu0 %v166
    %400 = vmatprep.subr.mxu0 0.0
    %401 = vmatpush1.msra.mxu0 %v165
    %402 = vmatprep.subr.mxu0 0.0
    %403 = vmatpush1.msra.mxu0 %v164
    %404 = vmatprep.subr.mxu0 0.0
    %405 = vmatpush1.msra.mxu0 %v163
    %406 = vmatprep.subr.mxu0 0.0
    %407 = vmatpush2.msra.mxu0 0.0
    %408 = vmatprep.subr.mxu0 0.0
    %409 = vmatpush2.msra.mxu0 0.0
    %410 = vmatprep.subr.mxu0 0.0
    %411 = vmatpush2.msra.mxu0 0.0
    %412 = vmatprep.subr.mxu0 0.0
    %413 = vmatpush2.msra.mxu0 0.0
    %414 = vmatprep.subr.mxu0 0.0
    %415 = vmatpush2.msra.mxu0 0.0
    %416 = vmatprep.subr.mxu0 0.0
    %417 = vmatpush2.msra.mxu0 0.0
    %418 = vmatprep.subr.mxu0 0.0
    %419 = vmatpush2.msra.mxu0 0.0
    %420 = vmatprep.subr.mxu0 0.0
    %421 = vmatpush2.msra.mxu0 0.0
    %422 = vmatprep.subr.mxu0 0.0
    %423 = vmatpush2.msra.mxu0 0.0
    %424 = vmatprep.subr.mxu0 0.0
    %425 = vmatpush2.msra.mxu0 0.0
    %426 = vmatprep.subr.mxu0 0.0
    %427 = vmatpush2.msra.mxu0 0.0
    %428 = vmatprep.subr.mxu0 0.0
    %429 = vmatpush2.msra.mxu0 0.0
    %430 = vmatprep.subr.mxu0 0.0
    %431 = vmatpush2.msra.mxu0 0.0
    %432 = vmatprep.subr.mxu0 0.0
    %433 = vmatpush2.msra.mxu0 0.0
    %434 = vmatprep.subr.mxu0 0.0
    %435 = vmatpush2.msra.mxu0 0.0
    %436 = vmatprep.subr.mxu0 0.0
    %437 = vmatpush2.msra.mxu0 0.0
    %438 = vmatprep.mubr.f32.mxu0 0.0
    %439 = vmatmul.mubr.f32.gmra.mxu0 %v366
    %v440 = vpop.f32.mrf.mxu0
    %v441 = vadd.f32 0.0, %v440
    %v442 = vpop.f32.mrf.mxu0
    %443 = vmatprep.mubr.f32.mxu0 0.0
    %444 = vmatmul.mubr.f32.gmra.mxu0 %v371
    %v445 = vpop.f32.mrf.mxu0
    %v446 = vadd.f32 0.0, %v445
    %v447 = vpop.f32.mrf.mxu0
    %448 = vdwg.mxu0
    %v449 = vsub.f32 %v441, %v295
    %v450 = vsub.f32 %v446, %v298
    %v451 = vmin.f32 %v449, 0.0
    %v452 = vmul.f32 %v450, 0.5
    %v453 = vfloor.f32 %v452
    %v454 = vmul.f32 %v453, 2.0
    %v455 = vsub.f32 %v450, %v454
    %v456 = vmul.f32 %v455, 2.0
    %v457 = vsub.f32 1.0, %v456
    %v458 = vmul.f32 %v457, 0.9995
    %v459 = vmul.f32 %v451, 1.442695
    %v460 = vpow.pop %v459
    %v461 = vmul.f32 %v458, %v460
    %v462 = vadd.f32 %v461, 1.0
    %v463 = vlog2.pop %v462
    %v464 = vmul.f32 %v463, 0.6931472
    %v465 = vsub.f32 1.0, %v461
    %v466 = vlog2.pop %v465
    %v467 = vmul.f32 %v466, 0.6931472
    %v468 = vsub.f32 %v464, %v467
    %469 = vst [vmem:[#allocation2] sm:$0xff] %v468
    %v470 = vld [vmem:[#allocation2] sm:$0xff]
    %s471 = scalar_lea.vmem [#allocation8], 64
    %v472 = vld [vmem:[%s471] sm:$0xf]
    %v473 = vld [vmem:[%s471 + $0x4] sm:$0xf]
    %v474 = vld [vmem:[%s471 + $0x8] sm:$0xf]
    %v475 = vld [vmem:[%s471 + $0xc] sm:$0xf]
    %v476 = vld [vmem:[%s471 + $0x10] sm:$0xf]
    %v477 = vld [vmem:[%s471 + $0x14] sm:$0xf]
    %v478 = vld [vmem:[%s471 + $0x18] sm:$0xf]
    %v479 = vld [vmem:[%s471 + $0x1c] sm:$0xf]
    %v480 = vld [vmem:[%s471 + $0x20] sm:$0xf]
    %v481 = vld [vmem:[%s471 + $0x24] sm:$0xf]
    %v482 = vld [vmem:[%s471 + $0x28] sm:$0xf]
    %v483 = vld [vmem:[%s471 + $0x2c] sm:$0xf]
    %v484 = vld [vmem:[%s471 + $0x30] sm:$0xf]
    %v485 = vld [vmem:[%s471 + $0x34] sm:$0xf]
    %v486 = vld [vmem:[%s471 + $0x38] sm:$0xf]
    %v487 = vld [vmem:[%s471 + $0x3c] sm:$0xf]
    %s488 = scalar_lea.vmem %s3, 1
    %v489 = vld [vmem:[%s488] sm:$0x1]
    %v491 = vlaneseq
    %v492 = vshrl.u32 %v491, 7
    %v493 = vsub.s32 0, %v492
    %v494 = vrot.slane %v489, %v493
    %v496 = vmul.f32 %v114, %v494
    %v513 = vunpack.c.l.b16 %v472
    %v514 = vunpack.c.l.b16 %v473
    %v515 = vunpack.c.l.b16 %v474
    %v516 = vunpack.c.l.b16 %v475
    %v517 = vunpack.c.l.b16 %v476
    %v518 = vunpack.c.l.b16 %v477
    %v519 = vunpack.c.l.b16 %v478
    %v520 = vunpack.c.l.b16 %v479
    %v521 = vunpack.c.l.b16 %v480
    %v522 = vunpack.c.l.b16 %v481
    %v523 = vunpack.c.l.b16 %v482
    %v524 = vunpack.c.l.b16 %v483
    %v525 = vunpack.c.l.b16 %v484
    %v526 = vunpack.c.l.b16 %v485
    %v527 = vunpack.c.l.b16 %v486
    %v528 = vunpack.c.l.b16 %v487
    %v529 = vpack.c.b16 %v514, %v513
    %v530 = vpack.c.b16 %v516, %v515
    %v531 = vpack.c.b16 %v518, %v517
    %v532 = vpack.c.b16 %v520, %v519
    %v533 = vpack.c.b16 %v522, %v521
    %v534 = vpack.c.b16 %v524, %v523
    %v535 = vpack.c.b16 %v526, %v525
    %v536 = vpack.c.b16 %v528, %v527
    %545 = vmatprep.subr.bf16.mxu0 0
    %546 = vmatpush1.bf16.msra.mxu0 %v536
    %547 = vmatprep.subr.bf16.mxu0 0
    %548 = vmatpush1.bf16.msra.mxu0 %v535
    %549 = vmatprep.subr.bf16.mxu0 0
    %550 = vmatpush1.bf16.msra.mxu0 %v534
    %551 = vmatprep.subr.bf16.mxu0 0
    %552 = vmatpush1.bf16.msra.mxu0 %v533
    %553 = vmatprep.subr.bf16.mxu0 0
    %554 = vmatpush1.bf16.msra.mxu0 %v532
    %555 = vmatprep.subr.bf16.mxu0 0
    %556 = vmatpush1.bf16.msra.mxu0 %v531
    %557 = vmatprep.subr.bf16.mxu0 0
    %558 = vmatpush1.bf16.msra.mxu0 %v530
    %559 = vmatprep.subr.bf16.mxu0 0
    %560 = vmatpush1.bf16.msra.mxu0 %v529
    %561 = vmatprep.subr.bf16.mxu0 0
    %562 = vmatpush2.bf16.msra.mxu0 0
    %563 = vmatprep.subr.bf16.mxu0 0
    %564 = vmatpush2.bf16.msra.mxu0 0
    %565 = vmatprep.subr.bf16.mxu0 0
    %566 = vmatpush2.bf16.msra.mxu0 0
    %567 = vmatprep.subr.bf16.mxu0 0
    %568 = vmatpush2.bf16.msra.mxu0 0
    %569 = vmatprep.subr.bf16.mxu0 0
    %570 = vmatpush2.bf16.msra.mxu0 0
    %571 = vmatprep.subr.bf16.mxu0 0
    %572 = vmatpush2.bf16.msra.mxu0 0
    %573 = vmatprep.subr.bf16.mxu0 0
    %574 = vmatpush2.bf16.msra.mxu0 0
    %575 = vmatprep.subr.bf16.mxu0 0
    %576 = vmatpush2.bf16.msra.mxu0 0
    %577 = vmatprep.mubr.f32.mxu0 0.0
    %578 = vmatmul.mubr.f32.gmra.mxu0 %v470
    %v579 = vpop.f32.mrf.mxu0
    %v580 = vadd.f32 %v496, %v579
    %v581 = vpop.f32.mrf.mxu0
    %582 = vdwg.mxu0
    %v583 = vmul.f32 %v580, 0.5
    %v584 = vtanh.pop %v583
    %v585 = vand.u32 2147483647, %v584
    %v586 = vmax.f32 %v585, 1e-30
    %v587 = vlog2.pop %v586
    %v588 = vmul.f32 %v587, 0.6931472
    %vm589 = vcmp.lt.f32.partialorder %v584, 0.0
    %v590 = vsel %vm589, 1, 0
    %v591 = vcvt.s32.f32 %v590
    %592 = vmatprep.subr.mxu0 0.0
    %593 = vmatpush1.msra.mxu0 %v146
    %594 = vmatprep.subr.mxu0 0.0
    %595 = vmatpush1.msra.mxu0 %v145
    %596 = vmatprep.subr.mxu0 0.0
    %597 = vmatpush1.msra.mxu0 %v144
    %598 = vmatprep.subr.mxu0 0.0
    %599 = vmatpush1.msra.mxu0 %v143
    %600 = vmatprep.subr.mxu0 0.0
    %601 = vmatpush1.msra.mxu0 %v142
    %602 = vmatprep.subr.mxu0 0.0
    %603 = vmatpush1.msra.mxu0 %v141
    %604 = vmatprep.subr.mxu0 0.0
    %605 = vmatpush1.msra.mxu0 %v140
    %606 = vmatprep.subr.mxu0 0.0
    %607 = vmatpush1.msra.mxu0 %v139
    %608 = vmatprep.subr.mxu0 0.0
    %609 = vmatpush1.msra.mxu0 %v138
    %610 = vmatprep.subr.mxu0 0.0
    %611 = vmatpush1.msra.mxu0 %v137
    %612 = vmatprep.subr.mxu0 0.0
    %613 = vmatpush1.msra.mxu0 %v136
    %614 = vmatprep.subr.mxu0 0.0
    %615 = vmatpush1.msra.mxu0 %v135
    %616 = vmatprep.subr.mxu0 0.0
    %617 = vmatpush1.msra.mxu0 %v134
    %618 = vmatprep.subr.mxu0 0.0
    %619 = vmatpush1.msra.mxu0 %v133
    %620 = vmatprep.subr.mxu0 0.0
    %621 = vmatpush1.msra.mxu0 %v132
    %622 = vmatprep.subr.mxu0 0.0
    %623 = vmatpush1.msra.mxu0 %v131
    %624 = vmatprep.subr.mxu0 0.0
    %625 = vmatpush2.msra.mxu0 0.0
    %626 = vmatprep.subr.mxu0 0.0
    %627 = vmatpush2.msra.mxu0 0.0
    %628 = vmatprep.subr.mxu0 0.0
    %629 = vmatpush2.msra.mxu0 0.0
    %630 = vmatprep.subr.mxu0 0.0
    %631 = vmatpush2.msra.mxu0 0.0
    %632 = vmatprep.subr.mxu0 0.0
    %633 = vmatpush2.msra.mxu0 0.0
    %634 = vmatprep.subr.mxu0 0.0
    %635 = vmatpush2.msra.mxu0 0.0
    %636 = vmatprep.subr.mxu0 0.0
    %637 = vmatpush2.msra.mxu0 0.0
    %638 = vmatprep.subr.mxu0 0.0
    %639 = vmatpush2.msra.mxu0 0.0
    %640 = vmatprep.subr.mxu0 0.0
    %641 = vmatpush2.msra.mxu0 0.0
    %642 = vmatprep.subr.mxu0 0.0
    %643 = vmatpush2.msra.mxu0 0.0
    %644 = vmatprep.subr.mxu0 0.0
    %645 = vmatpush2.msra.mxu0 0.0
    %646 = vmatprep.subr.mxu0 0.0
    %647 = vmatpush2.msra.mxu0 0.0
    %648 = vmatprep.subr.mxu0 0.0
    %649 = vmatpush2.msra.mxu0 0.0
    %650 = vmatprep.subr.mxu0 0.0
    %651 = vmatpush2.msra.mxu0 0.0
    %652 = vmatprep.subr.mxu0 0.0
    %653 = vmatpush2.msra.mxu0 0.0
    %654 = vmatprep.subr.mxu0 0.0
    %655 = vmatpush2.msra.mxu0 0.0
    %656 = vmatprep.mubr.f32.mxu0 0.0
    %657 = vmatmul.mubr.f32.gmra.mxu0 %v588
    %v658 = vpop.f32.mrf.mxu0
    %v659 = vadd.f32 0.0, %v658
    %v660 = vpop.f32.mrf.mxu0
    %661 = vmatprep.mubr.f32.mxu0 0.0
    %662 = vmatmul.mubr.f32.gmra.mxu0 %v591
    %v663 = vpop.f32.mrf.mxu0
    %v664 = vadd.f32 0.0, %v663
    %v665 = vpop.f32.mrf.mxu0
    %666 = vdwg.mxu0
    %667 = vmatprep.subr.mxu0 0.0
    %668 = vmatpush1.msra.mxu0 %v178
    %669 = vmatprep.subr.mxu0 0.0
    %670 = vmatpush1.msra.mxu0 %v177
    %671 = vmatprep.subr.mxu0 0.0
    %672 = vmatpush1.msra.mxu0 %v176
    %673 = vmatprep.subr.mxu0 0.0
    %674 = vmatpush1.msra.mxu0 %v175
    %675 = vmatprep.subr.mxu0 0.0
    %676 = vmatpush1.msra.mxu0 %v174
    %677 = vmatprep.subr.mxu0 0.0
    %678 = vmatpush1.msra.mxu0 %v173
    %679 = vmatprep.subr.mxu0 0.0
    %680 = vmatpush1.msra.mxu0 %v172
    %681 = vmatprep.subr.mxu0 0.0
    %682 = vmatpush1.msra.mxu0 %v171
    %683 = vmatprep.subr.mxu0 0.0
    %684 = vmatpush1.msra.mxu0 %v170
    %685 = vmatprep.subr.mxu0 0.0
    %686 = vmatpush1.msra.mxu0 %v169
    %687 = vmatprep.subr.mxu0 0.0
    %688 = vmatpush1.msra.mxu0 %v168
    %689 = vmatprep.subr.mxu0 0.0
    %690 = vmatpush1.msra.mxu0 %v167
    %691 = vmatprep.subr.mxu0 0.0
    %692 = vmatpush1.msra.mxu0 %v166
    %693 = vmatprep.subr.mxu0 0.0
    %694 = vmatpush1.msra.mxu0 %v165
    %695 = vmatprep.subr.mxu0 0.0
    %696 = vmatpush1.msra.mxu0 %v164
    %697 = vmatprep.subr.mxu0 0.0
    %698 = vmatpush1.msra.mxu0 %v163
    %699 = vmatprep.subr.mxu0 0.0
    %700 = vmatpush2.msra.mxu0 0.0
    %701 = vmatprep.subr.mxu0 0.0
    %702 = vmatpush2.msra.mxu0 0.0
    %703 = vmatprep.subr.mxu0 0.0
    %704 = vmatpush2.msra.mxu0 0.0
    %705 = vmatprep.subr.mxu0 0.0
    %706 = vmatpush2.msra.mxu0 0.0
    %707 = vmatprep.subr.mxu0 0.0
    %708 = vmatpush2.msra.mxu0 0.0
    %709 = vmatprep.subr.mxu0 0.0
    %710 = vmatpush2.msra.mxu0 0.0
    %711 = vmatprep.subr.mxu0 0.0
    %712 = vmatpush2.msra.mxu0 0.0
    %713 = vmatprep.subr.mxu0 0.0
    %714 = vmatpush2.msra.mxu0 0.0
    %715 = vmatprep.subr.mxu0 0.0
    %716 = vmatpush2.msra.mxu0 0.0
    %717 = vmatprep.subr.mxu0 0.0
    %718 = vmatpush2.msra.mxu0 0.0
    %719 = vmatprep.subr.mxu0 0.0
    %720 = vmatpush2.msra.mxu0 0.0
    %721 = vmatprep.subr.mxu0 0.0
    %722 = vmatpush2.msra.mxu0 0.0
    %723 = vmatprep.subr.mxu0 0.0
    %724 = vmatpush2.msra.mxu0 0.0
    %725 = vmatprep.subr.mxu0 0.0
    %726 = vmatpush2.msra.mxu0 0.0
    %727 = vmatprep.subr.mxu0 0.0
    %728 = vmatpush2.msra.mxu0 0.0
    %729 = vmatprep.subr.mxu0 0.0
    %730 = vmatpush2.msra.mxu0 0.0
    %731 = vmatprep.mubr.f32.mxu0 0.0
    %732 = vmatmul.mubr.f32.gmra.mxu0 %v659
    %v733 = vpop.f32.mrf.mxu0
    %v734 = vadd.f32 0.0, %v733
    %v735 = vpop.f32.mrf.mxu0
    %736 = vmatprep.mubr.f32.mxu0 0.0
    %737 = vmatmul.mubr.f32.gmra.mxu0 %v664
    %v738 = vpop.f32.mrf.mxu0
    %v739 = vadd.f32 0.0, %v738
    %v740 = vpop.f32.mrf.mxu0
    %741 = vdwg.mxu0
    %v742 = vsub.f32 %v734, %v588
    %v743 = vsub.f32 %v739, %v591
    %v744 = vmin.f32 %v742, 0.0
    %v745 = vmul.f32 %v743, 0.5
    %v746 = vfloor.f32 %v745
    %v747 = vmul.f32 %v746, 2.0
    %v748 = vsub.f32 %v743, %v747
    %v749 = vmul.f32 %v748, 2.0
    %v750 = vsub.f32 1.0, %v749
    %v751 = vmul.f32 %v750, 0.9995
    %v752 = vmul.f32 %v744, 1.442695
    %v753 = vpow.pop %v752
    %v754 = vmul.f32 %v751, %v753
    %v755 = vadd.f32 %v754, 1.0
    %v756 = vlog2.pop %v755
    %v757 = vmul.f32 %v756, 0.6931472
    %v758 = vsub.f32 1.0, %v754
    %v759 = vlog2.pop %v758
    %v760 = vmul.f32 %v759, 0.6931472
    %v761 = vsub.f32 %v757, %v760
    %762 = vst [vmem:[#allocation2] sm:$0xff] %v761
    %v763 = vld [vmem:[#allocation2] sm:$0xff]
    %s764 = scalar_lea.vmem [#allocation8], 128
    %v765 = vld [vmem:[%s764] sm:$0xf]
    %v766 = vld [vmem:[%s764 + $0x4] sm:$0xf]
    %v767 = vld [vmem:[%s764 + $0x8] sm:$0xf]
    %v768 = vld [vmem:[%s764 + $0xc] sm:$0xf]
    %v769 = vld [vmem:[%s764 + $0x10] sm:$0xf]
    %v770 = vld [vmem:[%s764 + $0x14] sm:$0xf]
    %v771 = vld [vmem:[%s764 + $0x18] sm:$0xf]
    %v772 = vld [vmem:[%s764 + $0x1c] sm:$0xf]
    %v773 = vld [vmem:[%s764 + $0x20] sm:$0xf]
    %v774 = vld [vmem:[%s764 + $0x24] sm:$0xf]
    %v775 = vld [vmem:[%s764 + $0x28] sm:$0xf]
    %v776 = vld [vmem:[%s764 + $0x2c] sm:$0xf]
    %v777 = vld [vmem:[%s764 + $0x30] sm:$0xf]
    %v778 = vld [vmem:[%s764 + $0x34] sm:$0xf]
    %v779 = vld [vmem:[%s764 + $0x38] sm:$0xf]
    %v780 = vld [vmem:[%s764 + $0x3c] sm:$0xf]
    %s781 = scalar_lea.vmem %s3, 2
    %v782 = vld [vmem:[%s781] sm:$0x1]
    %v784 = vlaneseq
    %v785 = vshrl.u32 %v784, 7
    %v786 = vsub.s32 0, %v785
    %v787 = vrot.slane %v782, %v786
    %v789 = vmul.f32 %v114, %v787
    %v806 = vunpack.c.l.b16 %v765
    %v807 = vunpack.c.l.b16 %v766
    %v808 = vunpack.c.l.b16 %v767
    %v809 = vunpack.c.l.b16 %v768
    %v810 = vunpack.c.l.b16 %v769
    %v811 = vunpack.c.l.b16 %v770
    %v812 = vunpack.c.l.b16 %v771
    %v813 = vunpack.c.l.b16 %v772
    %v814 = vunpack.c.l.b16 %v773
    %v815 = vunpack.c.l.b16 %v774
    %v816 = vunpack.c.l.b16 %v775
    %v817 = vunpack.c.l.b16 %v776
    %v818 = vunpack.c.l.b16 %v777
    %v819 = vunpack.c.l.b16 %v778
    %v820 = vunpack.c.l.b16 %v779
    %v821 = vunpack.c.l.b16 %v780
    %v822 = vpack.c.b16 %v807, %v806
    %v823 = vpack.c.b16 %v809, %v808
    %v824 = vpack.c.b16 %v811, %v810
    %v825 = vpack.c.b16 %v813, %v812
    %v826 = vpack.c.b16 %v815, %v814
    %v827 = vpack.c.b16 %v817, %v816
    %v828 = vpack.c.b16 %v819, %v818
    %v829 = vpack.c.b16 %v821, %v820
    %838 = vmatprep.subr.bf16.mxu0 0
    %839 = vmatpush1.bf16.msra.mxu0 %v829
    %840 = vmatprep.subr.bf16.mxu0 0
    %841 = vmatpush1.bf16.msra.mxu0 %v828
    %842 = vmatprep.subr.bf16.mxu0 0
    %843 = vmatpush1.bf16.msra.mxu0 %v827
    %844 = vmatprep.subr.bf16.mxu0 0
    %845 = vmatpush1.bf16.msra.mxu0 %v826
    %846 = vmatprep.subr.bf16.mxu0 0
    %847 = vmatpush1.bf16.msra.mxu0 %v825
    %848 = vmatprep.subr.bf16.mxu0 0
    %849 = vmatpush1.bf16.msra.mxu0 %v824
    %850 = vmatprep.subr.bf16.mxu0 0
    %851 = vmatpush1.bf16.msra.mxu0 %v823
    %852 = vmatprep.subr.bf16.mxu0 0
    %853 = vmatpush1.bf16.msra.mxu0 %v822
    %854 = vmatprep.subr.bf16.mxu0 0
    %855 = vmatpush2.bf16.msra.mxu0 0
    %856 = vmatprep.subr.bf16.mxu0 0
    %857 = vmatpush2.bf16.msra.mxu0 0
    %858 = vmatprep.subr.bf16.mxu0 0
    %859 = vmatpush2.bf16.msra.mxu0 0
    %860 = vmatprep.subr.bf16.mxu0 0
    %861 = vmatpush2.bf16.msra.mxu0 0
    %862 = vmatprep.subr.bf16.mxu0 0
    %863 = vmatpush2.bf16.msra.mxu0 0
    %864 = vmatprep.subr.bf16.mxu0 0
    %865 = vmatpush2.bf16.msra.mxu0 0
    %866 = vmatprep.subr.bf16.mxu0 0
    %867 = vmatpush2.bf16.msra.mxu0 0
    %868 = vmatprep.subr.bf16.mxu0 0
    %869 = vmatpush2.bf16.msra.mxu0 0
    %870 = vmatprep.mubr.f32.mxu0 0.0
    %871 = vmatmul.mubr.f32.gmra.mxu0 %v763
    %v872 = vpop.f32.mrf.mxu0
    %v873 = vadd.f32 %v789, %v872
    %v874 = vpop.f32.mrf.mxu0
    %875 = vdwg.mxu0
    %v876 = vmul.f32 %v873, 0.5
    %v877 = vtanh.pop %v876
    %v878 = vand.u32 2147483647, %v877
    %v879 = vmax.f32 %v878, 1e-30
    %v880 = vlog2.pop %v879
    %v881 = vmul.f32 %v880, 0.6931472
    %vm882 = vcmp.lt.f32.partialorder %v877, 0.0
    %v883 = vsel %vm882, 1, 0
    %v884 = vcvt.s32.f32 %v883
    %885 = vmatprep.subr.mxu0 0.0
    %886 = vmatpush1.msra.mxu0 %v146
    %887 = vmatprep.subr.mxu0 0.0
    %888 = vmatpush1.msra.mxu0 %v145
    %889 = vmatprep.subr.mxu0 0.0
    %890 = vmatpush1.msra.mxu0 %v144
    %891 = vmatprep.subr.mxu0 0.0
    %892 = vmatpush1.msra.mxu0 %v143
    %893 = vmatprep.subr.mxu0 0.0
    %894 = vmatpush1.msra.mxu0 %v142
    %895 = vmatprep.subr.mxu0 0.0
    %896 = vmatpush1.msra.mxu0 %v141
    %897 = vmatprep.subr.mxu0 0.0
    %898 = vmatpush1.msra.mxu0 %v140
    %899 = vmatprep.subr.mxu0 0.0
    %900 = vmatpush1.msra.mxu0 %v139
    %901 = vmatprep.subr.mxu0 0.0
    %902 = vmatpush1.msra.mxu0 %v138
    %903 = vmatprep.subr.mxu0 0.0
    %904 = vmatpush1.msra.mxu0 %v137
    %905 = vmatprep.subr.mxu0 0.0
    %906 = vmatpush1.msra.mxu0 %v136
    %907 = vmatprep.subr.mxu0 0.0
    %908 = vmatpush1.msra.mxu0 %v135
    %909 = vmatprep.subr.mxu0 0.0
    %910 = vmatpush1.msra.mxu0 %v134
    %911 = vmatprep.subr.mxu0 0.0
    %912 = vmatpush1.msra.mxu0 %v133
    %913 = vmatprep.subr.mxu0 0.0
    %914 = vmatpush1.msra.mxu0 %v132
    %915 = vmatprep.subr.mxu0 0.0
    %916 = vmatpush1.msra.mxu0 %v131
    %917 = vmatprep.subr.mxu0 0.0
    %918 = vmatpush2.msra.mxu0 0.0
    %919 = vmatprep.subr.mxu0 0.0
    %920 = vmatpush2.msra.mxu0 0.0
    %921 = vmatprep.subr.mxu0 0.0
    %922 = vmatpush2.msra.mxu0 0.0
    %923 = vmatprep.subr.mxu0 0.0
    %924 = vmatpush2.msra.mxu0 0.0
    %925 = vmatprep.subr.mxu0 0.0
    %926 = vmatpush2.msra.mxu0 0.0
    %927 = vmatprep.subr.mxu0 0.0
    %928 = vmatpush2.msra.mxu0 0.0
    %929 = vmatprep.subr.mxu0 0.0
    %930 = vmatpush2.msra.mxu0 0.0
    %931 = vmatprep.subr.mxu0 0.0
    %932 = vmatpush2.msra.mxu0 0.0
    %933 = vmatprep.subr.mxu0 0.0
    %934 = vmatpush2.msra.mxu0 0.0
    %935 = vmatprep.subr.mxu0 0.0
    %936 = vmatpush2.msra.mxu0 0.0
    %937 = vmatprep.subr.mxu0 0.0
    %938 = vmatpush2.msra.mxu0 0.0
    %939 = vmatprep.subr.mxu0 0.0
    %940 = vmatpush2.msra.mxu0 0.0
    %941 = vmatprep.subr.mxu0 0.0
    %942 = vmatpush2.msra.mxu0 0.0
    %943 = vmatprep.subr.mxu0 0.0
    %944 = vmatpush2.msra.mxu0 0.0
    %945 = vmatprep.subr.mxu0 0.0
    %946 = vmatpush2.msra.mxu0 0.0
    %947 = vmatprep.subr.mxu0 0.0
    %948 = vmatpush2.msra.mxu0 0.0
    %949 = vmatprep.mubr.f32.mxu0 0.0
    %950 = vmatmul.mubr.f32.gmra.mxu0 %v881
    %v951 = vpop.f32.mrf.mxu0
    %v952 = vadd.f32 0.0, %v951
    %v953 = vpop.f32.mrf.mxu0
    %954 = vmatprep.mubr.f32.mxu0 0.0
    %955 = vmatmul.mubr.f32.gmra.mxu0 %v884
    %v956 = vpop.f32.mrf.mxu0
    %v957 = vadd.f32 0.0, %v956
    %v958 = vpop.f32.mrf.mxu0
    %959 = vdwg.mxu0
    %960 = vmatprep.subr.mxu0 0.0
    %961 = vmatpush1.msra.mxu0 %v178
    %962 = vmatprep.subr.mxu0 0.0
    %963 = vmatpush1.msra.mxu0 %v177
    %964 = vmatprep.subr.mxu0 0.0
    %965 = vmatpush1.msra.mxu0 %v176
    %966 = vmatprep.subr.mxu0 0.0
    %967 = vmatpush1.msra.mxu0 %v175
    %968 = vmatprep.subr.mxu0 0.0
    %969 = vmatpush1.msra.mxu0 %v174
    %970 = vmatprep.subr.mxu0 0.0
    %971 = vmatpush1.msra.mxu0 %v173
    %972 = vmatprep.subr.mxu0 0.0
    %973 = vmatpush1.msra.mxu0 %v172
    %974 = vmatprep.subr.mxu0 0.0
    %975 = vmatpush1.msra.mxu0 %v171
    %976 = vmatprep.subr.mxu0 0.0
    %977 = vmatpush1.msra.mxu0 %v170
    %978 = vmatprep.subr.mxu0 0.0
    %979 = vmatpush1.msra.mxu0 %v169
    %980 = vmatprep.subr.mxu0 0.0
    %981 = vmatpush1.msra.mxu0 %v168
    %982 = vmatprep.subr.mxu0 0.0
    %983 = vmatpush1.msra.mxu0 %v167
    %984 = vmatprep.subr.mxu0 0.0
    %985 = vmatpush1.msra.mxu0 %v166
    %986 = vmatprep.subr.mxu0 0.0
    %987 = vmatpush1.msra.mxu0 %v165
    %988 = vmatprep.subr.mxu0 0.0
    %989 = vmatpush1.msra.mxu0 %v164
    %990 = vmatprep.subr.mxu0 0.0
    %991 = vmatpush1.msra.mxu0 %v163
    %992 = vmatprep.subr.mxu0 0.0
    %993 = vmatpush2.msra.mxu0 0.0
    %994 = vmatprep.subr.mxu0 0.0
    %995 = vmatpush2.msra.mxu0 0.0
    %996 = vmatprep.subr.mxu0 0.0
    %997 = vmatpush2.msra.mxu0 0.0
    %998 = vmatprep.subr.mxu0 0.0
    %999 = vmatpush2.msra.mxu0 0.0
    %1000 = vmatprep.subr.mxu0 0.0
    %1001 = vmatpush2.msra.mxu0 0.0
    %1002 = vmatprep.subr.mxu0 0.0
    %1003 = vmatpush2.msra.mxu0 0.0
    %1004 = vmatprep.subr.mxu0 0.0
    %1005 = vmatpush2.msra.mxu0 0.0
    %1006 = vmatprep.subr.mxu0 0.0
    %1007 = vmatpush2.msra.mxu0 0.0
    %1008 = vmatprep.subr.mxu0 0.0
    %1009 = vmatpush2.msra.mxu0 0.0
    %1010 = vmatprep.subr.mxu0 0.0
    %1011 = vmatpush2.msra.mxu0 0.0
    %1012 = vmatprep.subr.mxu0 0.0
    %1013 = vmatpush2.msra.mxu0 0.0
    %1014 = vmatprep.subr.mxu0 0.0
    %1015 = vmatpush2.msra.mxu0 0.0
    %1016 = vmatprep.subr.mxu0 0.0
    %1017 = vmatpush2.msra.mxu0 0.0
    %1018 = vmatprep.subr.mxu0 0.0
    %1019 = vmatpush2.msra.mxu0 0.0
    %1020 = vmatprep.subr.mxu0 0.0
    %1021 = vmatpush2.msra.mxu0 0.0
    %1022 = vmatprep.subr.mxu0 0.0
    %1023 = vmatpush2.msra.mxu0 0.0
    %1024 = vmatprep.mubr.f32.mxu0 0.0
    %1025 = vmatmul.mubr.f32.gmra.mxu0 %v952
    %v1026 = vpop.f32.mrf.mxu0
    %v1027 = vadd.f32 0.0, %v1026
    %v1028 = vpop.f32.mrf.mxu0
    %1029 = vmatprep.mubr.f32.mxu0 0.0
    %1030 = vmatmul.mubr.f32.gmra.mxu0 %v957
    %v1031 = vpop.f32.mrf.mxu0
    %v1032 = vadd.f32 0.0, %v1031
    %v1033 = vpop.f32.mrf.mxu0
    %1034 = vdwg.mxu0
    %v1035 = vsub.f32 %v1027, %v881
    %v1036 = vsub.f32 %v1032, %v884
    %v1037 = vmin.f32 %v1035, 0.0
    %v1038 = vmul.f32 %v1036, 0.5
    %v1039 = vfloor.f32 %v1038
    %v1040 = vmul.f32 %v1039, 2.0
    %v1041 = vsub.f32 %v1036, %v1040
    %v1042 = vmul.f32 %v1041, 2.0
    %v1043 = vsub.f32 1.0, %v1042
    %v1044 = vmul.f32 %v1043, 0.9995
    %v1045 = vmul.f32 %v1037, 1.442695
    %v1046 = vpow.pop %v1045
    %v1047 = vmul.f32 %v1044, %v1046
    %v1048 = vadd.f32 %v1047, 1.0
    %v1049 = vlog2.pop %v1048
    %v1050 = vmul.f32 %v1049, 0.6931472
    %v1051 = vsub.f32 1.0, %v1047
    %v1052 = vlog2.pop %v1051
    %v1053 = vmul.f32 %v1052, 0.6931472
    %v1054 = vsub.f32 %v1050, %v1053
    %1055 = vst [vmem:[#allocation2] sm:$0xff] %v1054
    // Predicated region
    $region62: #{tpu_custom_call.1} parent=1 // pred_check
      %p1056 = pneg %p109
    $region63: #{tpu_custom_call.1} parent=1 // pred_check_branch
      %1058 = sbr.rel (%p1056) target = $region65
    $region64: #{tpu_custom_call.1} parent=1 // pred_region
      %v1059 = vld [vmem:[#allocation2] sm:$0xff]
      %v1060 = vld [vmem:[#allocation12] sm:$0xf]
      %v1061 = vld [vmem:[#allocation12 + $0x4] sm:$0xf]
      %v1062 = vld [vmem:[#allocation12 + $0x8] sm:$0xf]
      %v1063 = vld [vmem:[#allocation12 + $0xc] sm:$0xf]
      %v1064 = vld [vmem:[#allocation12 + $0x10] sm:$0xf]
      %v1065 = vld [vmem:[#allocation12 + $0x14] sm:$0xf]
      %v1066 = vld [vmem:[#allocation12 + $0x18] sm:$0xf]
      %v1067 = vld [vmem:[#allocation12 + $0x1c] sm:$0xf]
      %v1068 = vld [vmem:[#allocation12 + $0x20] sm:$0xf]
      %v1069 = vld [vmem:[#allocation12 + $0x24] sm:$0xf]
      %v1070 = vld [vmem:[#allocation12 + $0x28] sm:$0xf]
      %v1071 = vld [vmem:[#allocation12 + $0x2c] sm:$0xf]
      %v1072 = vld [vmem:[#allocation12 + $0x30] sm:$0xf]
      %v1073 = vld [vmem:[#allocation12 + $0x34] sm:$0xf]
      %v1074 = vld [vmem:[#allocation12 + $0x38] sm:$0xf]
      %v1075 = vld [vmem:[#allocation12 + $0x3c] sm:$0xf]
      %v1076 = vld [vmem:[#allocation3] sm:$0xff]
      %v1077 = vld [vmem:[%s7] sm:$0x1]
      %v1079 = vlaneseq
      %v1080 = vshrl.u32 %v1079, 7
      %v1081 = vsub.s32 0, %v1080
      %v1082 = vrot.slane %v1077, %v1081
      %v1084 = vmul.f32 %v1076, %v1082
      %v1101 = vunpack.c.l.b16 %v1060
      %v1102 = vunpack.c.l.b16 %v1061
      %v1103 = vunpack.c.l.b16 %v1062
      %v1104 = vunpack.c.l.b16 %v1063
      %v1105 = vunpack.c.l.b16 %v1064
      %v1106 = vunpack.c.l.b16 %v1065
      %v1107 = vunpack.c.l.b16 %v1066
      %v1108 = vunpack.c.l.b16 %v1067
      %v1109 = vunpack.c.l.b16 %v1068
      %v1110 = vunpack.c.l.b16 %v1069
      %v1111 = vunpack.c.l.b16 %v1070
      %v1112 = vunpack.c.l.b16 %v1071
      %v1113 = vunpack.c.l.b16 %v1072
      %v1114 = vunpack.c.l.b16 %v1073
      %v1115 = vunpack.c.l.b16 %v1074
      %v1116 = vunpack.c.l.b16 %v1075
      %v1117 = vpack.c.b16 %v1102, %v1101
      %v1118 = vpack.c.b16 %v1104, %v1103
      %v1119 = vpack.c.b16 %v1106, %v1105
      %v1120 = vpack.c.b16 %v1108, %v1107
      %v1121 = vpack.c.b16 %v1110, %v1109
      %v1122 = vpack.c.b16 %v1112, %v1111
      %v1123 = vpack.c.b16 %v1114, %v1113
      %v1124 = vpack.c.b16 %v1116, %v1115
      %1133 = vmatprep.subr.bf16.mxu0 0
      %1134 = vmatpush1.bf16.msra.mxu0 %v1124
      %1135 = vmatprep.subr.bf16.mxu0 0
      %1136 = vmatpush1.bf16.msra.mxu0 %v1123
      %1137 = vmatprep.subr.bf16.mxu0 0
      %1138 = vmatpush1.bf16.msra.mxu0 %v1122
      %1139 = vmatprep.subr.bf16.mxu0 0
      %1140 = vmatpush1.bf16.msra.mxu0 %v1121
      %1141 = vmatprep.subr.bf16.mxu0 0
      %1142 = vmatpush1.bf16.msra.mxu0 %v1120
      %1143 = vmatprep.subr.bf16.mxu0 0
      %1144 = vmatpush1.bf16.msra.mxu0 %v1119
      %1145 = vmatprep.subr.bf16.mxu0 0
      %1146 = vmatpush1.bf16.msra.mxu0 %v1118
      %1147 = vmatprep.subr.bf16.mxu0 0
      %1148 = vmatpush1.bf16.msra.mxu0 %v1117
      %1149 = vmatprep.subr.bf16.mxu0 0
      %1150 = vmatpush2.bf16.msra.mxu0 0
      %1151 = vmatprep.subr.bf16.mxu0 0
      %1152 = vmatpush2.bf16.msra.mxu0 0
      %1153 = vmatprep.subr.bf16.mxu0 0
      %1154 = vmatpush2.bf16.msra.mxu0 0
      %1155 = vmatprep.subr.bf16.mxu0 0
      %1156 = vmatpush2.bf16.msra.mxu0 0
      %1157 = vmatprep.subr.bf16.mxu0 0
      %1158 = vmatpush2.bf16.msra.mxu0 0
      %1159 = vmatprep.subr.bf16.mxu0 0
      %1160 = vmatpush2.bf16.msra.mxu0 0
      %1161 = vmatprep.subr.bf16.mxu0 0
      %1162 = vmatpush2.bf16.msra.mxu0 0
      %1163 = vmatprep.subr.bf16.mxu0 0
      %1164 = vmatpush2.bf16.msra.mxu0 0
      %1165 = vmatprep.mubr.f32.mxu0 0.0
      %1166 = vmatmul.mubr.f32.gmra.mxu0 %v1059
      %v1167 = vpop.f32.mrf.mxu0
      %v1168 = vadd.f32 %v1084, %v1167
      %v1169 = vpop.f32.mrf.mxu0
      %1170 = vdwg.mxu0
      %v1171 = vsub.f32 0.0, %v1168
      %v1172 = vmul.f32 %v1171, 1.442695
      %v1173 = vpow.pop %v1172
      %v1174 = vadd.f32 %v1173, 1.0
      %v1175 = vrcp.pop %v1174
      %1176 = vst [vmem:[#allocation14] sm:$0xff] %v1175
    $region65: #{tpu_custom_call.1} parent=1 // pred_fallthru
      _
    // Predicated region
    $region66: #{tpu_custom_call.1} parent=1 // pred_check
      _
    $region67: #{tpu_custom_call.1} parent=1 // pred_check_branch
      %1178 = sbr.rel (0) target = $region69
    $region68: #{tpu_custom_call.1} parent=1 // pred_region
      %s1180 = ssub.s32 128, 128
      %1181 = vsyncadd [#allocation5], %s1180
      %s1183 = sshll.u32 [#allocation14], 4
      %s1184 = int_to_ptr.vmem [resolvable:$true] %s1183
      %1186 = dma.vmem_to_hbm [thread:$0]  %s1184, 128, %s8, [#allocation5]
    $region69: #{tpu_custom_call.1} parent=1 // pred_fallthru
      _
    // Predicated region
    $region70: #{tpu_custom_call.1} parent=1 // pred_check
      _
    $region71: #{tpu_custom_call.1} parent=1 // pred_check_branch
      %1188 = sbr.rel (0) target = $region73
    $region72: #{tpu_custom_call.1} parent=1 // pred_region
      %1189 = dma.done [#allocation5], 128
    $region73: #{tpu_custom_call.1} parent=1 // pred_fallthru
      _
    %1190 = vsyncpa [#allocation4], 1
    %1191 = vsyncpa [#allocation7], 1
    %1192 = vsyncpa [#allocation10], 1
    %1193 = vsyncpa [#allocation13], 1
    %1194 = vsyncpa [#allocation5], 1

</llo_original>
